<compile_context>
chip_gen: v7x
topology: tpu7x:2x2x1
jax: 0.10.0
libtpu: 0.0.40
codegen_flags: <defaults>
</compile_context>

<pallas_src>
import numpy as np
import jax
import jax.numpy as jnp
from jax import lax
from jax.experimental import pallas as pl
from jax.experimental.pallas import tpu as pltpu

# Model hyper-parameters (QuantumBackbone defaults)
IN_DIM = 3
OUT_DIM = 1
EMBED_DIM = 16
NUM_HEADS = 2
NUM_LAYERS = 2
HEAD_DIM = EMBED_DIM // NUM_HEADS
IN_PAD = 8  # IN_DIM (+ 1 bias column) zero-padded to a sublane multiple


# ----------------------------------------------------------------------------
# Parameter construction (raw, module-equivalent) and host-side packing
# ----------------------------------------------------------------------------
def init_params(key):
    """Raw parameters mirroring the PyTorch module (QR already applied)."""
    keys = jax.random.split(key, 6 + NUM_LAYERS)
    w_in = np.asarray(jax.random.normal(keys[0], (IN_DIM, EMBED_DIM), jnp.float32)) * 0.1
    b_in = np.asarray(jax.random.normal(keys[1], (EMBED_DIM,), jnp.float32)) * 0.1
    w_out = np.asarray(jax.random.normal(keys[2], (EMBED_DIM, OUT_DIM), jnp.float32)) * 0.1
    b_out = np.asarray(jax.random.normal(keys[3], (OUT_DIM,), jnp.float32)) * 0.1
    # Non-trivial phase / amplification so the folded math is actually tested.
    theta = np.asarray(jax.random.normal(keys[4], (NUM_LAYERS, EMBED_DIM), jnp.float32)) * 0.1
    amp = 1.0 + np.asarray(jax.random.normal(keys[5], (NUM_LAYERS,), jnp.float32)) * 0.1

    # Effective complex weights W = conj(Q).T with Q, _ = qr(W_r + i W_i),
    # stored as real/imag pairs, projection order [q, k, v, out].
    Wr = np.zeros((NUM_LAYERS, 4, EMBED_DIM, EMBED_DIM), np.float32)
    Wi = np.zeros((NUM_LAYERS, 4, EMBED_DIM, EMBED_DIM), np.float32)
    for l in range(NUM_LAYERS):
        lk = jax.random.split(keys[6 + l], 8)
        for j in range(4):
            wr = np.asarray(jax.random.normal(lk[2 * j], (EMBED_DIM, EMBED_DIM), jnp.float32))
            wi = np.asarray(jax.random.normal(lk[2 * j + 1], (EMBED_DIM, EMBED_DIM), jnp.float32))
            q, _ = np.linalg.qr(wr.astype(np.complex64) + 1j * wi.astype(np.complex64))
            Wr[l, j] = np.real(q).T        # Re(conj(Q).T)
            Wi[l, j] = -np.imag(q).T       # Im(conj(Q).T)
    return (w_in, b_in, Wr, Wi, theta.astype(np.float32),
            amp.astype(np.float32), w_out, b_out)


def pack_params(params):
    """Host-side layout plumbing: fuse / fold weights for the kernel."""
    w_in, b_in, Wr, Wi, theta, amp, w_out, b_out = params
    E, H, D, L = EMBED_DIM, NUM_HEADS, HEAD_DIM, NUM_LAYERS

    # |a*s| == a*|s| only for a >= 0; required to fold amp into the q weights.
    assert np.all(amp > 0), "amplification must be > 0 to fold into |scores|"

    # input_linear weight zero-padded 3 -> 8 rows; b_in folded into row IN_DIM
    # (the wrapper feeds a constant-1 column there).
    w_in_p = np.zeros((IN_PAD, E), np.float32)
    w_in_p[:IN_DIM] = w_in
    w_in_p[IN_DIM] = b_in

    # amp / sqrt(D) folded into the q column blocks of the fused qkv weight.
    amp_eff = (amp.astype(np.float64) / np.sqrt(D))

    # Fused q/k/v projection, lane-dense 8*E = 128 output columns.
    # Per-head 64-col block: [a*qr | a*qi | a*qi | -a*qr | kr | ki | vr | vi].
    wqkv = np.zeros((L, E, 8 * E), np.float32)
    # Folded (phase-gate + unitary out-proj + real+0.1*imag readout), rows
    # permuted to match the kernel's per-head [o_r | o_i] concat order.
    # For the last layer, output_linear is folded in as well (column 0).
    wout = np.zeros((L, 2 * E, E), np.float32)

    for l in range(L):
        Wq_r, Wk_r, Wv_r, Wo_r = Wr[l]
        Wq_i, Wk_i, Wv_i, Wo_i = Wi[l]
        a = np.float32(amp_eff[l])
        for hh in range(H):
            c = slice(hh * D, (hh + 1) * D)
            base = hh * 8 * D
            wqkv[l, :, base + 0 * D: base + 1 * D] = a * Wq_r[:, c]
            wqkv[l, :, base + 1 * D: base + 2 * D] = a * Wq_i[:, c]
            wqkv[l, :, base + 2 * D: base + 3 * D] = a * Wq_i[:, c]
            wqkv[l, :, base + 3 * D: base + 4 * D] = -a * Wq_r[:, c]
            wqkv[l, :, base + 4 * D: base + 5 * D] = Wk_r[:, c]
            wqkv[l, :, base + 5 * D: base + 6 * D] = Wk_i[:, c]
            wqkv[l, :, base + 6 * D: base + 7 * D] = Wv_r[:, c]
            wqkv[l, :, base + 7 * D: base + 8 * D] = Wv_i[:, c]

        # h_new = o_r @ M_r + o_i @ M_i, with the phase gate folded in:
        #   A  = Wo_r + 0.1*Wo_i ,  B  = 0.1*Wo_r - Wo_i
        #   M_r = diag(cos th) A + diag(sin th) B
        #   M_i = diag(cos th) B - diag(sin th) A
        ct = np.cos(theta[l]).astype(np.float64)
        st = np.sin(theta[l]).astype(np.float64)
        A = Wo_r.astype(np.float64) + 0.1 * Wo_i.astype(np.float64)
        Bm = 0.1 * Wo_r.astype(np.float64) - Wo_i.astype(np.float64)
        M_r = ct[:, None] * A + st[:, None] * Bm
        M_i = ct[:, None] * Bm - st[:, None] * A

        W_full = np.zeros((2 * E, E), np.float64)
        for hh in range(H):
            r = slice(hh * D, (hh + 1) * D)
            W_full[hh * 2 * D: hh * 2 * D + D] = M_r[r]
            W_full[hh * 2 * D + D: (hh + 1) * 2 * D] = M_i[r]

        if l == L - 1:
            # Fold output_linear into the last layer's ending matmul.  The
            # fused (2E, OUT_DIM) weight sits in the first OUT_DIM columns of
            # the shared (L, 2E, E) weight slab (remaining columns zero).
            fused = W_full @ w_out.astype(np.float64)        # (2E, OUT_DIM)
            wout[l, :, :OUT_DIM] = fused.astype(np.float32)
        else:
            wout[l] = W_full.astype(np.float32)

    b_out_scalar = float(np.asarray(b_out).reshape(-1)[0])   # OUT_DIM == 1

    return (jnp.asarray(w_in_p), jnp.asarray(wqkv), jnp.asarray(wout),
            b_out_scalar)


# ----------------------------------------------------------------------------
# Pallas kernel + wrapper
# ----------------------------------------------------------------------------
def quantum_backbone(feats, packed):
    w_in_p, wqkv, wout, b_out_scalar = packed
    B, N, _ = feats.shape
    BN = B * N
    E, H, D = EMBED_DIM, NUM_HEADS, HEAD_DIM
    assert N & (N - 1) == 0, "cross-batch mask uses a shift; N must be pow2"
    shift = N.bit_length() - 1

    # Wrapper-side layout plumbing: flatten batch, append a constant-1 column
    # (b_in fold) and zero-pad the contraction dim to IN_PAD = 8.
    x2d = jnp.concatenate(
        [feats.reshape(BN, IN_DIM).astype(jnp.float32),
         jnp.ones((BN, 1), jnp.float32),
         jnp.zeros((BN, IN_PAD - IN_DIM - 1), jnp.float32)], axis=-1)

    def kernel(x_ref, w_in_ref, wqkv_ref, wout_ref, y_ref):
        # Cross-batch additive mask, built once per call (B, N are static):
        # softmax runs over all BN key rows; cross-batch entries get -1e30 so
        # exp underflows to exactly 0 and they never contribute.
        row_b = lax.broadcasted_iota(jnp.int32, (BN, BN), 0) >> shift
        col_b = lax.broadcasted_iota(jnp.int32, (BN, BN), 1) >> shift
        mask = jnp.where(row_b == col_b, 0.0, -1e30).astype(jnp.float32)

        # input_linear (+ bias via the constant-1 column): one matmul.
        h = jnp.dot(x_ref[...], w_in_ref[...],
                    preferred_element_type=jnp.float32)

        for l in range(NUM_LAYERS):
            # Fused complex q/k/v projection: one lane-dense matmul (E -> 128).
            qkv = jnp.dot(h, wqkv_ref[l], preferred_element_type=jnp.float32)

            head_out = []
            for hh in range(H):                 # H = 2, tiny static unroll
                base = hh * 8 * D
                qcr = qkv[:, base + 0 * D: base + 2 * D]   # [qr |  qi] * amp
                qci = qkv[:, base + 2 * D: base + 4 * D]   # [qi | -qr] * amp
                kc = qkv[:, base + 4 * D: base + 6 * D]    # [kr |  ki]
                vc = qkv[:, base + 6 * D: base + 8 * D]    # [vr |  vi]

                # One score matmul per head: stack real/imag query rows along
                # M, contract the packed real/imag K axis against [kr|ki]:
                #   s[:BN] = qr@kr.T + qi@ki.T   (real part)
                #   s[BN:] = qi@kr.T - qr@ki.T   (imag part)
                qcat = jnp.concatenate([qcr, qci], axis=0)      # (2BN, 2D)
                s = lax.dot_general(qcat, kc, (((1,), (1,)), ((), ())),
                                    preferred_element_type=jnp.float32)
                s_r, s_i = s[:BN], s[BN:]

                # |scores| (amp/sqrt(D) already folded in), mask, softmax.
                mag = jnp.sqrt(s_r * s_r + s_i * s_i) + mask
                m = jnp.max(mag, axis=-1, keepdims=True)
                e = jnp.exp(mag - m)
                attn = e * pl.reciprocal(jnp.sum(e, axis=-1, keepdims=True),
                                         approx=True)

                # attn @ [vr|vi]  ->  [o_r_h | o_i_h]   (BN, 2D)
                head_out.append(jnp.dot(attn, vc,
                                        preferred_element_type=jnp.float32))

            # Lane concat of the 2D head outputs; phase gate + unitary
            # out-proj + (real + 0.1*imag) readout — and for the last layer
            # output_linear as well — are folded into one (2E, E) weight.
            ocat = jnp.concatenate(head_out, axis=-1)           # (BN, 2E)
            h = jnp.dot(ocat, wout_ref[l], preferred_element_type=jnp.float32)

        # output_linear weight is folded into column 0 of the last wout; only
        # the bias (compile-time scalar constant) remains.
        y_ref[...] = h[:, :OUT_DIM] + b_out_scalar

    vmem = pl.BlockSpec(memory_space=pltpu.MemorySpace.VMEM)

    # All operands are tiny (<< VMEM on v5e/v6e/v7x): a single grid-less call
    # with 4 VMEM-resident inputs and 1 output is optimal here.  At production
    # BN, add grid=(pl.cdiv(BN, TILE),) with a row-block BlockSpec on x/y
    # (weights full-extent), dimension_semantics=("parallel",) to use both
    # v7x TensorCores, size TILE against v7x's 32 MiB scoped VMEM (double-
    # buffered blocks), and feed the MXU bf16 inputs on v6e/v7x.
    y = pl.pallas_call(
        kernel,
        out_shape=jax.ShapeDtypeStruct((BN, OUT_DIM), jnp.float32),
        in_specs=[vmem, vmem, vmem, vmem],
        out_specs=vmem,
    )(x2d, w_in_p, wqkv, wout)

    return y.reshape(B, N, OUT_DIM)


# ----------------------------------------------------------------------------
# Pure NumPy (complex) reference mirroring the PyTorch forward
# ----------------------------------------------------------------------------
def reference_forward(feats, params):
    w_in, b_in, Wr, Wi, theta, amp, w_out, b_out = [
        np.asarray(p, np.float64) for p in params]
    x = np.asarray(feats, np.float64)
    B, N, _ = x.shape
    H, D = NUM_HEADS, HEAD_DIM
    h = x.reshape(B * N, IN_DIM) @ w_in + b_in[None, :]
    for l in range(NUM_LAYERS):
        Wq = Wr[l, 0] + 1j * Wi[l, 0]
        Wk = Wr[l, 1] + 1j * Wi[l, 1]
        Wv = Wr[l, 2] + 1j * Wi[l, 2]
        Wo = Wr[l, 3] + 1j * Wi[l, 3]
        hc = h.astype(np.complex128)
        q = (hc @ Wq).reshape(B, N, H, D).transpose(0, 2, 1, 3)
        k = (hc @ Wk).reshape(B, N, H, D).transpose(0, 2, 1, 3)
        v = (hc @ Wv).reshape(B, N, H, D).transpose(0, 2, 1, 3)
        scores = q @ np.conj(k).transpose(0, 1, 3, 2) / np.sqrt(D)
        mag = np.abs(scores) * amp[l]
        e = np.exp(mag - mag.max(-1, keepdims=True))
        attn = e / e.sum(-1, keepdims=True)
        out = (attn.astype(np.complex128) @ v).transpose(0, 2, 1, 3)
        out = out.reshape(B * N, EMBED_DIM) * np.exp(1j * theta[l])
        outc = out @ Wo
        h = np.real(outc) + 0.1 * np.imag(outc)
    y = h @ w_out + b_out[None, :]
    return y.reshape(B, N, OUT_DIM)


if __name__ == "__main__":
    B, N = 2, 8
    key = jax.random.PRNGKey(0)
    pkey, xkey = jax.random.split(key)
    params = init_params(pkey)
    packed = pack_params(params)
    feats = jax.random.normal(xkey, (B, N, IN_DIM), jnp.float32)

    out = jax.block_until_ready(quantum_backbone(feats, packed))

    ref = reference_forward(np.asarray(feats), params)
    assert out.shape == (B, N, OUT_DIM)
    np.testing.assert_allclose(np.asarray(out, np.float64), ref,
                               atol=2e-2, rtol=2e-2)
    print("KERNEL_OK")
</pallas_src>

<mosaic_0001>
module attributes {stable_mosaic.version = 11 : i64} {
  func.func @kernel(%arg0: memref<16x8xf32, #tpu.memory_space<vmem>>, %arg1: memref<8x16xf32, #tpu.memory_space<vmem>>, %arg2: memref<2x16x128xf32, #tpu.memory_space<vmem>>, %arg3: memref<2x32x16xf32, #tpu.memory_space<vmem>>, %arg4: memref<16x1xf32, #tpu.memory_space<vmem>>) attributes {dimension_semantics = [], scalar_prefetch = 0 : i64, scratch_operands = 0 : i64, tpu.core_type = #tpu.core_type<tc>} {
    %0 = tpu.iota {dimensions = array<i32: 0>} : vector<16x16xi32>
    %c3_i32 = arith.constant 3 : i32
    %1 = vector.broadcast %c3_i32 : i32 to vector<16x16xi32>
    %2 = arith.shrsi %0, %1 : vector<16x16xi32>
    %3 = tpu.iota {dimensions = array<i32: 1>} : vector<16x16xi32>
    %c3_i32_0 = arith.constant 3 : i32
    %4 = vector.broadcast %c3_i32_0 : i32 to vector<16x16xi32>
    %5 = arith.shrsi %3, %4 : vector<16x16xi32>
    %6 = arith.cmpi eq, %2, %5 : vector<16x16xi32>
    %cst = arith.constant 0.000000e+00 : f32
    %cst_1 = arith.constant -1.000000e+30 : f32
    %7 = vector.broadcast %cst : f32 to vector<16x16xf32>
    %8 = vector.broadcast %cst_1 : f32 to vector<16x16xf32>
    %9 = arith.select %6, %7, %8 : vector<16x16xi1>, vector<16x16xf32>
    %c0 = arith.constant 0 : index
    %c0_2 = arith.constant 0 : index
    %10 = vector.load %arg0[%c0, %c0_2] : memref<16x8xf32, #tpu.memory_space<vmem>>, vector<16x8xf32>
    %c0_3 = arith.constant 0 : index
    %c0_4 = arith.constant 0 : index
    %11 = vector.load %arg1[%c0_3, %c0_4] : memref<8x16xf32, #tpu.memory_space<vmem>>, vector<8x16xf32>
    %cst_5 = arith.constant dense<0.000000e+00> : vector<16x16xf32>
    %12 = tpu.matmul %10, %11, %cst_5 {dimension_numbers = #tpu.dot_dimension_numbers<[1], [0], [0], [1], [0, 0, 1, 1], [], []>} : vector<16x8xf32>, vector<8x16xf32>, vector<16x16xf32> -> vector<16x16xf32>
    %c0_6 = arith.constant 0 : index
    %c0_7 = arith.constant 0 : index
    %c0_8 = arith.constant 0 : index
    %13 = vector.load %arg2[%c0_6, %c0_7, %c0_8] : memref<2x16x128xf32, #tpu.memory_space<vmem>>, vector<1x16x128xf32>
    %14 = vector.shape_cast %13 : vector<1x16x128xf32> to vector<16x128xf32>
    %cst_9 = arith.constant dense<0.000000e+00> : vector<16x128xf32>
    %15 = tpu.matmul %12, %14, %cst_9 {dimension_numbers = #tpu.dot_dimension_numbers<[1], [0], [0], [1], [0, 0, 1, 1], [], []>} : vector<16x16xf32>, vector<16x128xf32>, vector<16x128xf32> -> vector<16x128xf32>
    %16 = vector.extract_strided_slice %15 {offsets = [0, 0], sizes = [16, 16], strides = [1, 1]} : vector<16x128xf32> to vector<16x16xf32>
    %17 = vector.extract_strided_slice %15 {offsets = [0, 16], sizes = [16, 16], strides = [1, 1]} : vector<16x128xf32> to vector<16x16xf32>
    %18 = vector.extract_strided_slice %15 {offsets = [0, 32], sizes = [16, 16], strides = [1, 1]} : vector<16x128xf32> to vector<16x16xf32>
    %19 = vector.extract_strided_slice %15 {offsets = [0, 48], sizes = [16, 16], strides = [1, 1]} : vector<16x128xf32> to vector<16x16xf32>
    %20 = tpu.concatenate %16, %17 in 0 : vector<16x16xf32>, vector<16x16xf32> -> vector<32x16xf32>
    %cst_10 = arith.constant dense<0.000000e+00> : vector<32x16xf32>
    %21 = tpu.matmul %20, %18, %cst_10 {dimension_numbers = #tpu.dot_dimension_numbers<[1], [1], [0], [0], [0, 0, 1, 0], [], []>} : vector<32x16xf32>, vector<16x16xf32>, vector<32x16xf32> -> vector<32x16xf32>
    %22 = vector.extract_strided_slice %21 {offsets = [0, 0], sizes = [16, 16], strides = [1, 1]} : vector<32x16xf32> to vector<16x16xf32>
    %23 = vector.extract_strided_slice %21 {offsets = [16, 0], sizes = [16, 16], strides = [1, 1]} : vector<32x16xf32> to vector<16x16xf32>
    %24 = arith.mulf %22, %22 : vector<16x16xf32>
    %25 = arith.mulf %23, %23 : vector<16x16xf32>
    %26 = arith.addf %24, %25 : vector<16x16xf32>
    %27 = math.sqrt %26 : vector<16x16xf32>
    %28 = arith.addf %27, %9 : vector<16x16xf32>
    %cst_11 = arith.constant dense<0xFF800000> : vector<16xf32>
    %29 = vector.multi_reduction <maximumf>, %28, %cst_11 [1] : vector<16x16xf32> to vector<16xf32>
    %30 = vector.shape_cast %29 : vector<16xf32> to vector<16x1xf32>
    %31 = vector.broadcast %30 : vector<16x1xf32> to vector<16x16xf32>
    %32 = arith.subf %28, %31 : vector<16x16xf32>
    %33 = math.exp %32 : vector<16x16xf32>
    %cst_12 = arith.constant dense<0.000000e+00> : vector<16xf32>
    %34 = vector.multi_reduction <add>, %33, %cst_12 [1] : vector<16x16xf32> to vector<16xf32>
    %35 = vector.shape_cast %34 : vector<16xf32> to vector<16x1xf32>
    %36 = tpu.reciprocal %35 {approx = true} : vector<16x1xf32> -> vector<16x1xf32>
    %37 = vector.broadcast %36 : vector<16x1xf32> to vector<16x16xf32>
    %38 = arith.mulf %33, %37 : vector<16x16xf32>
    %cst_13 = arith.constant dense<0.000000e+00> : vector<16x16xf32>
    %39 = tpu.matmul %38, %19, %cst_13 {dimension_numbers = #tpu.dot_dimension_numbers<[1], [0], [0], [1], [0, 0, 1, 1], [], []>} : vector<16x16xf32>, vector<16x16xf32>, vector<16x16xf32> -> vector<16x16xf32>
    %40 = vector.extract_strided_slice %15 {offsets = [0, 64], sizes = [16, 16], strides = [1, 1]} : vector<16x128xf32> to vector<16x16xf32>
    %41 = vector.extract_strided_slice %15 {offsets = [0, 80], sizes = [16, 16], strides = [1, 1]} : vector<16x128xf32> to vector<16x16xf32>
    %42 = vector.extract_strided_slice %15 {offsets = [0, 96], sizes = [16, 16], strides = [1, 1]} : vector<16x128xf32> to vector<16x16xf32>
    %43 = vector.extract_strided_slice %15 {offsets = [0, 112], sizes = [16, 16], strides = [1, 1]} : vector<16x128xf32> to vector<16x16xf32>
    %44 = tpu.concatenate %40, %41 in 0 : vector<16x16xf32>, vector<16x16xf32> -> vector<32x16xf32>
    %cst_14 = arith.constant dense<0.000000e+00> : vector<32x16xf32>
    %45 = tpu.matmul %44, %42, %cst_14 {dimension_numbers = #tpu.dot_dimension_numbers<[1], [1], [0], [0], [0, 0, 1, 0], [], []>} : vector<32x16xf32>, vector<16x16xf32>, vector<32x16xf32> -> vector<32x16xf32>
    %46 = vector.extract_strided_slice %45 {offsets = [0, 0], sizes = [16, 16], strides = [1, 1]} : vector<32x16xf32> to vector<16x16xf32>
    %47 = vector.extract_strided_slice %45 {offsets = [16, 0], sizes = [16, 16], strides = [1, 1]} : vector<32x16xf32> to vector<16x16xf32>
    %48 = arith.mulf %46, %46 : vector<16x16xf32>
    %49 = arith.mulf %47, %47 : vector<16x16xf32>
    %50 = arith.addf %48, %49 : vector<16x16xf32>
    %51 = math.sqrt %50 : vector<16x16xf32>
    %52 = arith.addf %51, %9 : vector<16x16xf32>
    %cst_15 = arith.constant dense<0xFF800000> : vector<16xf32>
    %53 = vector.multi_reduction <maximumf>, %52, %cst_15 [1] : vector<16x16xf32> to vector<16xf32>
    %54 = vector.shape_cast %53 : vector<16xf32> to vector<16x1xf32>
    %55 = vector.broadcast %54 : vector<16x1xf32> to vector<16x16xf32>
    %56 = arith.subf %52, %55 : vector<16x16xf32>
    %57 = math.exp %56 : vector<16x16xf32>
    %cst_16 = arith.constant dense<0.000000e+00> : vector<16xf32>
    %58 = vector.multi_reduction <add>, %57, %cst_16 [1] : vector<16x16xf32> to vector<16xf32>
    %59 = vector.shape_cast %58 : vector<16xf32> to vector<16x1xf32>
    %60 = tpu.reciprocal %59 {approx = true} : vector<16x1xf32> -> vector<16x1xf32>
    %61 = vector.broadcast %60 : vector<16x1xf32> to vector<16x16xf32>
    %62 = arith.mulf %57, %61 : vector<16x16xf32>
    %cst_17 = arith.constant dense<0.000000e+00> : vector<16x16xf32>
    %63 = tpu.matmul %62, %43, %cst_17 {dimension_numbers = #tpu.dot_dimension_numbers<[1], [0], [0], [1], [0, 0, 1, 1], [], []>} : vector<16x16xf32>, vector<16x16xf32>, vector<16x16xf32> -> vector<16x16xf32>
    %64 = tpu.concatenate %39, %63 in 1 : vector<16x16xf32>, vector<16x16xf32> -> vector<16x32xf32>
    %c0_18 = arith.constant 0 : index
    %c0_19 = arith.constant 0 : index
    %c0_20 = arith.constant 0 : index
    %65 = vector.load %arg3[%c0_18, %c0_19, %c0_20] : memref<2x32x16xf32, #tpu.memory_space<vmem>>, vector<1x32x16xf32>
    %66 = vector.shape_cast %65 : vector<1x32x16xf32> to vector<32x16xf32>
    %cst_21 = arith.constant dense<0.000000e+00> : vector<16x16xf32>
    %67 = tpu.matmul %64, %66, %cst_21 {dimension_numbers = #tpu.dot_dimension_numbers<[1], [0], [0], [1], [0, 0, 1, 1], [], []>} : vector<16x32xf32>, vector<32x16xf32>, vector<16x16xf32> -> vector<16x16xf32>
    %c1 = arith.constant 1 : index
    %c0_22 = arith.constant 0 : index
    %c0_23 = arith.constant 0 : index
    %68 = vector.load %arg2[%c1, %c0_22, %c0_23] : memref<2x16x128xf32, #tpu.memory_space<vmem>>, vector<1x16x128xf32>
    %69 = vector.shape_cast %68 : vector<1x16x128xf32> to vector<16x128xf32>
    %cst_24 = arith.constant dense<0.000000e+00> : vector<16x128xf32>
    %70 = tpu.matmul %67, %69, %cst_24 {dimension_numbers = #tpu.dot_dimension_numbers<[1], [0], [0], [1], [0, 0, 1, 1], [], []>} : vector<16x16xf32>, vector<16x128xf32>, vector<16x128xf32> -> vector<16x128xf32>
    %71 = vector.extract_strided_slice %70 {offsets = [0, 0], sizes = [16, 16], strides = [1, 1]} : vector<16x128xf32> to vector<16x16xf32>
    %72 = vector.extract_strided_slice %70 {offsets = [0, 16], sizes = [16, 16], strides = [1, 1]} : vector<16x128xf32> to vector<16x16xf32>
    %73 = vector.extract_strided_slice %70 {offsets = [0, 32], sizes = [16, 16], strides = [1, 1]} : vector<16x128xf32> to vector<16x16xf32>
    %74 = vector.extract_strided_slice %70 {offsets = [0, 48], sizes = [16, 16], strides = [1, 1]} : vector<16x128xf32> to vector<16x16xf32>
    %75 = tpu.concatenate %71, %72 in 0 : vector<16x16xf32>, vector<16x16xf32> -> vector<32x16xf32>
    %cst_25 = arith.constant dense<0.000000e+00> : vector<32x16xf32>
    %76 = tpu.matmul %75, %73, %cst_25 {dimension_numbers = #tpu.dot_dimension_numbers<[1], [1], [0], [0], [0, 0, 1, 0], [], []>} : vector<32x16xf32>, vector<16x16xf32>, vector<32x16xf32> -> vector<32x16xf32>
    %77 = vector.extract_strided_slice %76 {offsets = [0, 0], sizes = [16, 16], strides = [1, 1]} : vector<32x16xf32> to vector<16x16xf32>
    %78 = vector.extract_strided_slice %76 {offsets = [16, 0], sizes = [16, 16], strides = [1, 1]} : vector<32x16xf32> to vector<16x16xf32>
    %79 = arith.mulf %77, %77 : vector<16x16xf32>
    %80 = arith.mulf %78, %78 : vector<16x16xf32>
    %81 = arith.addf %79, %80 : vector<16x16xf32>
    %82 = math.sqrt %81 : vector<16x16xf32>
    %83 = arith.addf %82, %9 : vector<16x16xf32>
    %cst_26 = arith.constant dense<0xFF800000> : vector<16xf32>
    %84 = vector.multi_reduction <maximumf>, %83, %cst_26 [1] : vector<16x16xf32> to vector<16xf32>
    %85 = vector.shape_cast %84 : vector<16xf32> to vector<16x1xf32>
    %86 = vector.broadcast %85 : vector<16x1xf32> to vector<16x16xf32>
    %87 = arith.subf %83, %86 : vector<16x16xf32>
    %88 = math.exp %87 : vector<16x16xf32>
    %cst_27 = arith.constant dense<0.000000e+00> : vector<16xf32>
    %89 = vector.multi_reduction <add>, %88, %cst_27 [1] : vector<16x16xf32> to vector<16xf32>
    %90 = vector.shape_cast %89 : vector<16xf32> to vector<16x1xf32>
    %91 = tpu.reciprocal %90 {approx = true} : vector<16x1xf32> -> vector<16x1xf32>
    %92 = vector.broadcast %91 : vector<16x1xf32> to vector<16x16xf32>
    %93 = arith.mulf %88, %92 : vector<16x16xf32>
    %cst_28 = arith.constant dense<0.000000e+00> : vector<16x16xf32>
    %94 = tpu.matmul %93, %74, %cst_28 {dimension_numbers = #tpu.dot_dimension_numbers<[1], [0], [0], [1], [0, 0, 1, 1], [], []>} : vector<16x16xf32>, vector<16x16xf32>, vector<16x16xf32> -> vector<16x16xf32>
    %95 = vector.extract_strided_slice %70 {offsets = [0, 64], sizes = [16, 16], strides = [1, 1]} : vector<16x128xf32> to vector<16x16xf32>
    %96 = vector.extract_strided_slice %70 {offsets = [0, 80], sizes = [16, 16], strides = [1, 1]} : vector<16x128xf32> to vector<16x16xf32>
    %97 = vector.extract_strided_slice %70 {offsets = [0, 96], sizes = [16, 16], strides = [1, 1]} : vector<16x128xf32> to vector<16x16xf32>
    %98 = vector.extract_strided_slice %70 {offsets = [0, 112], sizes = [16, 16], strides = [1, 1]} : vector<16x128xf32> to vector<16x16xf32>
    %99 = tpu.concatenate %95, %96 in 0 : vector<16x16xf32>, vector<16x16xf32> -> vector<32x16xf32>
    %cst_29 = arith.constant dense<0.000000e+00> : vector<32x16xf32>
    %100 = tpu.matmul %99, %97, %cst_29 {dimension_numbers = #tpu.dot_dimension_numbers<[1], [1], [0], [0], [0, 0, 1, 0], [], []>} : vector<32x16xf32>, vector<16x16xf32>, vector<32x16xf32> -> vector<32x16xf32>
    %101 = vector.extract_strided_slice %100 {offsets = [0, 0], sizes = [16, 16], strides = [1, 1]} : vector<32x16xf32> to vector<16x16xf32>
    %102 = vector.extract_strided_slice %100 {offsets = [16, 0], sizes = [16, 16], strides = [1, 1]} : vector<32x16xf32> to vector<16x16xf32>
    %103 = arith.mulf %101, %101 : vector<16x16xf32>
    %104 = arith.mulf %102, %102 : vector<16x16xf32>
    %105 = arith.addf %103, %104 : vector<16x16xf32>
    %106 = math.sqrt %105 : vector<16x16xf32>
    %107 = arith.addf %106, %9 : vector<16x16xf32>
    %cst_30 = arith.constant dense<0xFF800000> : vector<16xf32>
    %108 = vector.multi_reduction <maximumf>, %107, %cst_30 [1] : vector<16x16xf32> to vector<16xf32>
    %109 = vector.shape_cast %108 : vector<16xf32> to vector<16x1xf32>
    %110 = vector.broadcast %109 : vector<16x1xf32> to vector<16x16xf32>
    %111 = arith.subf %107, %110 : vector<16x16xf32>
    %112 = math.exp %111 : vector<16x16xf32>
    %cst_31 = arith.constant dense<0.000000e+00> : vector<16xf32>
    %113 = vector.multi_reduction <add>, %112, %cst_31 [1] : vector<16x16xf32> to vector<16xf32>
    %114 = vector.shape_cast %113 : vector<16xf32> to vector<16x1xf32>
    %115 = tpu.reciprocal %114 {approx = true} : vector<16x1xf32> -> vector<16x1xf32>
    %116 = vector.broadcast %115 : vector<16x1xf32> to vector<16x16xf32>
    %117 = arith.mulf %112, %116 : vector<16x16xf32>
    %cst_32 = arith.constant dense<0.000000e+00> : vector<16x16xf32>
    %118 = tpu.matmul %117, %98, %cst_32 {dimension_numbers = #tpu.dot_dimension_numbers<[1], [0], [0], [1], [0, 0, 1, 1], [], []>} : vector<16x16xf32>, vector<16x16xf32>, vector<16x16xf32> -> vector<16x16xf32>
    %119 = tpu.concatenate %94, %118 in 1 : vector<16x16xf32>, vector<16x16xf32> -> vector<16x32xf32>
    %c1_33 = arith.constant 1 : index
    %c0_34 = arith.constant 0 : index
    %c0_35 = arith.constant 0 : index
    %120 = vector.load %arg3[%c1_33, %c0_34, %c0_35] : memref<2x32x16xf32, #tpu.memory_space<vmem>>, vector<1x32x16xf32>
    %121 = vector.shape_cast %120 : vector<1x32x16xf32> to vector<32x16xf32>
    %cst_36 = arith.constant dense<0.000000e+00> : vector<16x16xf32>
    %122 = tpu.matmul %119, %121, %cst_36 {dimension_numbers = #tpu.dot_dimension_numbers<[1], [0], [0], [1], [0, 0, 1, 1], [], []>} : vector<16x32xf32>, vector<32x16xf32>, vector<16x16xf32> -> vector<16x16xf32>
    %123 = vector.extract_strided_slice %122 {offsets = [0, 0], sizes = [16, 1], strides = [1, 1]} : vector<16x16xf32> to vector<16x1xf32>
    %cst_37 = arith.constant 0.0339911245 : f32
    %124 = vector.broadcast %cst_37 : f32 to vector<16x1xf32>
    %125 = arith.addf %123, %124 : vector<16x1xf32>
    %c0_38 = arith.constant 0 : index
    %c0_39 = arith.constant 0 : index
    %126 = vector.load %arg4[%c0_38, %c0_39] : memref<16x1xf32, #tpu.memory_space<vmem>>, vector<16x1xf32>
    tpu.vector_store %arg4[%c0_38, %c0_39], %125 {strides = array<i32>} : memref<16x1xf32, #tpu.memory_space<vmem>>, vector<16x1xf32>,
    return
  }
}

</mosaic_0001>

<llo_original>
// kernel: tpu_custom_call.1
$region0: #{tpu_custom_call.1}
  #allocation0 [shape = 'u32[]', space=smem, size = 0x4, offset = 0x4, fixed_abs, tag = 'smem constant byte address 0x4 - core index']
  #allocation1 [shape = 'u32[144,128]{1,0:T(1,128)}', space=vmem, size = 0x12000, scoped, tag = 'internal scratch']
  %s0 = inlined_call_operand.vmem [shape: f32[16,8], index: 0, kind: input, shape index: {}]
  %s1 = inlined_call_operand.vmem [shape: f32[8,16], index: 1, kind: input, shape index: {}]
  %s2 = inlined_call_operand.vmem [shape: f32[2,16,128], index: 2, kind: input, shape index: {}]
  %s3 = inlined_call_operand.vmem [shape: f32[2,32,16], index: 3, kind: input, shape index: {}]
  %s4 = inlined_call_operand.vmem [shape: f32[16,1], index: 4, kind: output, shape index: {}]
  %s5 = sld [smem:[#allocation0]]
  $region26: #{tpu_custom_call.1} parent=0
    _
  %s7 = ssub.s32 1, %s5
  %s8 = scalar_select 0, %s7, %s5
  // Predicated region
  $region2: #{tpu_custom_call.1} parent=0 // pred_check
    _
  $region3: #{tpu_custom_call.1} parent=0 // pred_check_branch
    %10 = sbr.rel (0) target = $region5
  $region4: #{tpu_custom_call.1} parent=0 // pred_region
    _
  $region5: #{tpu_custom_call.1} parent=0 // pred_fallthru
    _
  // Predicated region
  $region6: #{tpu_custom_call.1} parent=0 // pred_check
    _
  $region7: #{tpu_custom_call.1} parent=0 // pred_check_branch
    %12 = sbr.rel (0) target = $region9
  $region8: #{tpu_custom_call.1} parent=0 // pred_region
    _
  $region9: #{tpu_custom_call.1} parent=0 // pred_fallthru
    _
  // Predicated region
  $region10: #{tpu_custom_call.1} parent=0 // pred_check
    _
  $region11: #{tpu_custom_call.1} parent=0 // pred_check_branch
    %14 = sbr.rel (0) target = $region13
  $region12: #{tpu_custom_call.1} parent=0 // pred_region
    _
  $region13: #{tpu_custom_call.1} parent=0 // pred_fallthru
    _
  // Predicated region
  $region14: #{tpu_custom_call.1} parent=0 // pred_check
    _
  $region15: #{tpu_custom_call.1} parent=0 // pred_check_branch
    %16 = sbr.rel (0) target = $region17
  $region16: #{tpu_custom_call.1} parent=0 // pred_region
    _
  $region17: #{tpu_custom_call.1} parent=0 // pred_fallthru
    _
  %v17 = vlaneseq
  %v18 = vshrl.u32 %v17, 7
  %v19 = vadd.s32 %v18, 8
  %v20 = vshra.s32 %v18, 3
  %v21 = vshra.s32 %v19, 3
  %v22 = vlaneseq
  %v23 = vand.u32 %v22, 127
  %v24 = vshra.s32 %v23, 3
  %vm25 = vcmp.eq.s32.totalorder %v20, %v24
  %vm26 = vcmp.eq.s32.totalorder %v21, %v24
  %v27 = vsel %vm25, 0.0, -1e+30
  %v28 = vsel %vm26, 0.0, -1e+30
  %v29 = vld [vmem:[%s0] sm:$0xff]
  %v30 = vld [vmem:[%s0 + $0x8] sm:$0xff]
  %v31 = vld [vmem:[%s1] sm:$0xff]
  %vm32 = vcmask 64512
  %v34 = vsel %vm32, %v29, 0
  %v37 = vsel %vm32, %v30, 0
  %39 = vmatprep.subr.mxu0 0.0
  %40 = vmatpush1.msra.mxu0 %v31
  %41 = vmatprep.subr.mxu0 0.0
  %42 = vmatpush1.msra.mxu0 0.0
  %43 = vmatprep.subr.mxu0 0.0
  %44 = vmatpush1.msra.mxu0 0.0
  %45 = vmatprep.subr.mxu0 0.0
  %46 = vmatpush1.msra.mxu0 0.0
  %47 = vmatprep.subr.mxu0 0.0
  %48 = vmatpush1.msra.mxu0 0.0
  %49 = vmatprep.subr.mxu0 0.0
  %50 = vmatpush1.msra.mxu0 0.0
  %51 = vmatprep.subr.mxu0 0.0
  %52 = vmatpush1.msra.mxu0 0.0
  %53 = vmatprep.subr.mxu0 0.0
  %54 = vmatpush1.msra.mxu0 0.0
  %55 = vmatprep.subr.mxu0 0.0
  %56 = vmatpush1.msra.mxu0 0.0
  %57 = vmatprep.subr.mxu0 0.0
  %58 = vmatpush1.msra.mxu0 0.0
  %59 = vmatprep.subr.mxu0 0.0
  %60 = vmatpush1.msra.mxu0 0.0
  %61 = vmatprep.subr.mxu0 0.0
  %62 = vmatpush1.msra.mxu0 0.0
  %63 = vmatprep.subr.mxu0 0.0
  %64 = vmatpush1.msra.mxu0 0.0
  %65 = vmatprep.subr.mxu0 0.0
  %66 = vmatpush1.msra.mxu0 0.0
  %67 = vmatprep.subr.mxu0 0.0
  %68 = vmatpush1.msra.mxu0 0.0
  %69 = vmatprep.subr.mxu0 0.0
  %70 = vmatpush1.msra.mxu0 0.0
  %71 = vmatprep.subr.mxu0 0.0
  %72 = vmatpush1.msra.mxu0 0.0
  %73 = vmatprep.subr.mxu0 0.0
  %74 = vmatpush1.msra.mxu0 0.0
  %75 = vmatprep.subr.mxu0 0.0
  %76 = vmatpush1.msra.mxu0 0.0
  %77 = vmatprep.subr.mxu0 0.0
  %78 = vmatpush1.msra.mxu0 0.0
  %79 = vmatprep.subr.mxu0 0.0
  %80 = vmatpush1.msra.mxu0 0.0
  %81 = vmatprep.subr.mxu0 0.0
  %82 = vmatpush1.msra.mxu0 0.0
  %83 = vmatprep.subr.mxu0 0.0
  %84 = vmatpush1.msra.mxu0 0.0
  %85 = vmatprep.subr.mxu0 0.0
  %86 = vmatpush1.msra.mxu0 0.0
  %87 = vmatprep.subr.mxu0 0.0
  %88 = vmatpush1.msra.mxu0 0.0
  %89 = vmatprep.subr.mxu0 0.0
  %90 = vmatpush1.msra.mxu0 0.0
  %91 = vmatprep.subr.mxu0 0.0
  %92 = vmatpush1.msra.mxu0 0.0
  %93 = vmatprep.subr.mxu0 0.0
  %94 = vmatpush1.msra.mxu0 0.0
  %95 = vmatprep.subr.mxu0 0.0
  %96 = vmatpush1.msra.mxu0 0.0
  %97 = vmatprep.subr.mxu0 0.0
  %98 = vmatpush1.msra.mxu0 0.0
  %99 = vmatprep.subr.mxu0 0.0
  %100 = vmatpush1.msra.mxu0 0.0
  %101 = vmatprep.subr.mxu0 0.0
  %102 = vmatpush1.msra.mxu0 0.0
  %103 = vmatprep.mubr.f32.mxu0 0.0
  %104 = vmatmul.mubr.f32.gmra.mrb[0].mxu0 %v34
  %v105 = vpop.f32.mrb[0].mxu0
  %v106 = vadd.f32 0.0, %v105
  %v107 = vpop.f32.mrb[0].mxu0
  %108 = vmatprep.mubr.f32.mxu0 0.0
  %109 = vmatmul.mubr.f32.gmra.mrb[0].mxu0 %v37
  %v110 = vpop.f32.mrb[0].mxu0
  %v111 = vadd.f32 0.0, %v110
  %v112 = vpop.f32.mrb[0].mxu0
  %113 = vdwg.mxu0
  %v114 = vld [vmem:[%s2] sm:$0xff]
  %v115 = vld [vmem:[%s2 + $0x8] sm:$0xff]
  %vm116 = vcmask 130048
  %v118 = vsel %vm116, %v106, 0
  %v121 = vsel %vm116, %v111, 0
  %123 = vmatprep.subr.mxu0 0.0
  %124 = vmatpush1.msra.mxu0 %v114
  %125 = vmatprep.subr.mxu0 0.0
  %126 = vmatpush1.msra.mxu0 %v115
  %127 = vmatprep.subr.mxu0 0.0
  %128 = vmatpush1.msra.mxu0 0.0
  %129 = vmatprep.subr.mxu0 0.0
  %130 = vmatpush1.msra.mxu0 0.0
  %131 = vmatprep.subr.mxu0 0.0
  %132 = vmatpush1.msra.mxu0 0.0
  %133 = vmatprep.subr.mxu0 0.0
  %134 = vmatpush1.msra.mxu0 0.0
  %135 = vmatprep.subr.mxu0 0.0
  %136 = vmatpush1.msra.mxu0 0.0
  %137 = vmatprep.subr.mxu0 0.0
  %138 = vmatpush1.msra.mxu0 0.0
  %139 = vmatprep.subr.mxu0 0.0
  %140 = vmatpush1.msra.mxu0 0.0
  %141 = vmatprep.subr.mxu0 0.0
  %142 = vmatpush1.msra.mxu0 0.0
  %143 = vmatprep.subr.mxu0 0.0
  %144 = vmatpush1.msra.mxu0 0.0
  %145 = vmatprep.subr.mxu0 0.0
  %146 = vmatpush1.msra.mxu0 0.0
  %147 = vmatprep.subr.mxu0 0.0
  %148 = vmatpush1.msra.mxu0 0.0
  %149 = vmatprep.subr.mxu0 0.0
  %150 = vmatpush1.msra.mxu0 0.0
  %151 = vmatprep.subr.mxu0 0.0
  %152 = vmatpush1.msra.mxu0 0.0
  %153 = vmatprep.subr.mxu0 0.0
  %154 = vmatpush1.msra.mxu0 0.0
  %155 = vmatprep.subr.mxu0 0.0
  %156 = vmatpush1.msra.mxu0 0.0
  %157 = vmatprep.subr.mxu0 0.0
  %158 = vmatpush1.msra.mxu0 0.0
  %159 = vmatprep.subr.mxu0 0.0
  %160 = vmatpush1.msra.mxu0 0.0
  %161 = vmatprep.subr.mxu0 0.0
  %162 = vmatpush1.msra.mxu0 0.0
  %163 = vmatprep.subr.mxu0 0.0
  %164 = vmatpush1.msra.mxu0 0.0
  %165 = vmatprep.subr.mxu0 0.0
  %166 = vmatpush1.msra.mxu0 0.0
  %167 = vmatprep.subr.mxu0 0.0
  %168 = vmatpush1.msra.mxu0 0.0
  %169 = vmatprep.subr.mxu0 0.0
  %170 = vmatpush1.msra.mxu0 0.0
  %171 = vmatprep.subr.mxu0 0.0
  %172 = vmatpush1.msra.mxu0 0.0
  %173 = vmatprep.subr.mxu0 0.0
  %174 = vmatpush1.msra.mxu0 0.0
  %175 = vmatprep.subr.mxu0 0.0
  %176 = vmatpush1.msra.mxu0 0.0
  %177 = vmatprep.subr.mxu0 0.0
  %178 = vmatpush1.msra.mxu0 0.0
  %179 = vmatprep.subr.mxu0 0.0
  %180 = vmatpush1.msra.mxu0 0.0
  %181 = vmatprep.subr.mxu0 0.0
  %182 = vmatpush1.msra.mxu0 0.0
  %183 = vmatprep.subr.mxu0 0.0
  %184 = vmatpush1.msra.mxu0 0.0
  %185 = vmatprep.subr.mxu0 0.0
  %186 = vmatpush1.msra.mxu0 0.0
  %187 = vmatprep.mubr.f32.mxu0 0.0
  %188 = vmatmul.mubr.f32.gmra.mrb[0].mxu0 %v118
  %v189 = vpop.f32.mrb[0].mxu0
  %v190 = vadd.f32 0.0, %v189
  %v191 = vpop.f32.mrb[0].mxu0
  %192 = vmatprep.mubr.f32.mxu0 0.0
  %193 = vmatmul.mubr.f32.gmra.mrb[0].mxu0 %v121
  %v194 = vpop.f32.mrb[0].mxu0
  %v195 = vadd.f32 0.0, %v194
  %v196 = vpop.f32.mrb[0].mxu0
  %197 = vdwg.mxu0
  %200 = vrot.lane.b32.xlu0 %v190, 112
  %v201 = vpop.permute.xlu0 %200
  %202 = vrot.lane.b32.xlu0 %v195, 112
  %v203 = vpop.permute.xlu0 %202
  %204 = vrot.lane.b32.xlu0 %v190, 96
  %v205 = vpop.permute.xlu0 %204
  %206 = vrot.lane.b32.xlu0 %v195, 96
  %v207 = vpop.permute.xlu0 %206
  %v208 = vsel %vm116, %v190, 0
  %v210 = vsel %vm116, %v195, 0
  %v212 = vsel %vm116, %v201, 0
  %v214 = vsel %vm116, %v203, 0
  %v216 = vsel %vm116, %v205, 0
  %v218 = vsel %vm116, %v207, 0
  %220 = vmatprep.subr.mxu0 0.0
  %221 = vmatpush1.xpose.msra.mxu0 %v216
  %222 = vmatprep.subr.mxu0 0.0
  %223 = vmatpush1.xpose.msra.mxu0 %v218
  %224 = vmatprep.subr.mxu0 0.0
  %225 = vmatpush1.xpose.msra.mxu0 0.0
  %226 = vmatprep.subr.mxu0 0.0
  %227 = vmatpush1.xpose.msra.mxu0 0.0
  %228 = vmatprep.subr.mxu0 0.0
  %229 = vmatpush1.xpose.msra.mxu0 0.0
  %230 = vmatprep.subr.mxu0 0.0
  %231 = vmatpush1.xpose.msra.mxu0 0.0
  %232 = vmatprep.subr.mxu0 0.0
  %233 = vmatpush1.xpose.msra.mxu0 0.0
  %234 = vmatprep.subr.mxu0 0.0
  %235 = vmatpush1.xpose.msra.mxu0 0.0
  %236 = vmatprep.subr.mxu0 0.0
  %237 = vmatpush1.xpose.msra.mxu0 0.0
  %238 = vmatprep.subr.mxu0 0.0
  %239 = vmatpush1.xpose.msra.mxu0 0.0
  %240 = vmatprep.subr.mxu0 0.0
  %241 = vmatpush1.xpose.msra.mxu0 0.0
  %242 = vmatprep.subr.mxu0 0.0
  %243 = vmatpush1.xpose.msra.mxu0 0.0
  %244 = vmatprep.subr.mxu0 0.0
  %245 = vmatpush1.xpose.msra.mxu0 0.0
  %246 = vmatprep.subr.mxu0 0.0
  %247 = vmatpush1.xpose.msra.mxu0 0.0
  %248 = vmatprep.subr.mxu0 0.0
  %249 = vmatpush1.xpose.msra.mxu0 0.0
  %250 = vmatprep.subr.mxu0 0.0
  %251 = vmatpush1.xpose.msra.mxu0 0.0
  %252 = vmatprep.subr.mxu0 0.0
  %253 = vmatpush1.xpose.msra.mxu0 0.0
  %254 = vmatprep.subr.mxu0 0.0
  %255 = vmatpush1.xpose.msra.mxu0 0.0
  %256 = vmatprep.subr.mxu0 0.0
  %257 = vmatpush1.xpose.msra.mxu0 0.0
  %258 = vmatprep.subr.mxu0 0.0
  %259 = vmatpush1.xpose.msra.mxu0 0.0
  %260 = vmatprep.subr.mxu0 0.0
  %261 = vmatpush1.xpose.msra.mxu0 0.0
  %262 = vmatprep.subr.mxu0 0.0
  %263 = vmatpush1.xpose.msra.mxu0 0.0
  %264 = vmatprep.subr.mxu0 0.0
  %265 = vmatpush1.xpose.msra.mxu0 0.0
  %266 = vmatprep.subr.mxu0 0.0
  %267 = vmatpush1.xpose.msra.mxu0 0.0
  %268 = vmatprep.subr.mxu0 0.0
  %269 = vmatpush1.xpose.msra.mxu0 0.0
  %270 = vmatprep.subr.mxu0 0.0
  %271 = vmatpush1.xpose.msra.mxu0 0.0
  %272 = vmatprep.subr.mxu0 0.0
  %273 = vmatpush1.xpose.msra.mxu0 0.0
  %274 = vmatprep.subr.mxu0 0.0
  %275 = vmatpush1.xpose.msra.mxu0 0.0
  %276 = vmatprep.subr.mxu0 0.0
  %277 = vmatpush1.xpose.msra.mxu0 0.0
  %278 = vmatprep.subr.mxu0 0.0
  %279 = vmatpush1.xpose.msra.mxu0 0.0
  %280 = vmatprep.subr.mxu0 0.0
  %281 = vmatpush1.xpose.msra.mxu0 0.0
  %282 = vmatprep.subr.mxu0 0.0
  %283 = vmatpush1.xpose.msra.mxu0 0.0
  %284 = vmatprep.mubr.f32.mxu0 0.0
  %285 = vmatmul.mubr.f32.gmra.mrb[0].mxu0 %v208
  %v286 = vpop.f32.mrb[0].mxu0
  %v287 = vadd.f32 0.0, %v286
  %v288 = vpop.f32.mrb[0].mxu0
  %289 = vmatprep.mubr.f32.mxu0 0.0
  %290 = vmatmul.mubr.f32.gmra.mrb[0].mxu0 %v210
  %v291 = vpop.f32.mrb[0].mxu0
  %v292 = vadd.f32 0.0, %v291
  %v293 = vpop.f32.mrb[0].mxu0
  %294 = vmatprep.mubr.f32.mxu0 0.0
  %295 = vmatmul.mubr.f32.gmra.mrb[0].mxu0 %v212
  %v296 = vpop.f32.mrb[0].mxu0
  %v297 = vadd.f32 0.0, %v296
  %v298 = vpop.f32.mrb[0].mxu0
  %299 = vmatprep.mubr.f32.mxu0 0.0
  %300 = vmatmul.mubr.f32.gmra.mrb[0].mxu0 %v214
  %v301 = vpop.f32.mrb[0].mxu0
  %v302 = vadd.f32 0.0, %v301
  %v303 = vpop.f32.mrb[0].mxu0
  %304 = vdwg.mxu0
  %v305 = vmul.f32 %v287, %v287
  %v306 = vmul.f32 %v292, %v292
  %v307 = vmul.f32 %v297, %v297
  %v308 = vmul.f32 %v302, %v302
  %v309 = vadd.f32 %v305, %v307
  %v310 = vadd.f32 %v306, %v308
  %v311 = vrsqrt.pop %v309
  %v312 = vmul.f32 %v309, %v311
  %vm313 = vcmp.eq.f32.partialorder %v309, inf
  %v314 = vsel %vm313, %v309, %v312
  %vm315 = vcmp.eq.f32.partialorder %v309, 0.0
  %v316 = vand.u32 %v309, 2147483648
  %v317 = vsel %vm315, %v316, %v314
  %v318 = vrsqrt.pop %v310
  %v319 = vmul.f32 %v310, %v318
  %vm320 = vcmp.eq.f32.partialorder %v310, inf
  %v321 = vsel %vm320, %v310, %v319
  %vm322 = vcmp.eq.f32.partialorder %v310, 0.0
  %v323 = vand.u32 %v310, 2147483648
  %v324 = vsel %vm322, %v323, %v321
  %v325 = vadd.f32 %v317, %v27
  %v326 = vadd.f32 %v324, %v28
  %v327 = vsel %vm116, %v325, -inf
  %328 = vmax.xlane.f32.xlu0 %v327
  %v329 = vpop.xlane.xlu0 %328
  %v330 = vsel %vm116, %v326, -inf
  %331 = vmax.xlane.f32.xlu0 %v330
  %v332 = vpop.xlane.xlu0 %331
  %v333 = vsub.f32 %v325, %v329
  %v334 = vsub.f32 %v326, %v332
  %v335 = vmul.f32 %v333, 1.442695
  %v336 = vpow.pop %v335
  %v337 = vmul.f32 %v334, 1.442695
  %v338 = vpow.pop %v337
  %v339 = vsel %vm116, %v336, 0.0
  %340 = vadd.xlane.f32.xlu0 %v339
  %v341 = vpop.xlane.xlu0 %340
  %v342 = vsel %vm116, %v338, 0.0
  %343 = vadd.xlane.f32.xlu0 %v342
  %v344 = vpop.xlane.xlu0 %343
  %v345 = vrcp.pop %v341
  %v346 = vrcp.pop %v344
  %v347 = vmul.f32 %v336, %v345
  %v348 = vmul.f32 %v338, %v346
  %349 = vrot.lane.b32.xlu0 %v190, 80
  %v350 = vpop.permute.xlu0 %349
  %351 = vrot.lane.b32.xlu0 %v195, 80
  %v352 = vpop.permute.xlu0 %351
  %v356 = vsel %vm116, %v347, 0
  %v359 = vsel %vm116, %v348, 0
  %361 = vmatprep.subr.mxu0 0.0
  %362 = vmatpush1.msra.mxu0 %v350
  %363 = vmatprep.subr.mxu0 0.0
  %364 = vmatpush1.msra.mxu0 %v352
  %365 = vmatprep.subr.mxu0 0.0
  %366 = vmatpush1.msra.mxu0 0.0
  %367 = vmatprep.subr.mxu0 0.0
  %368 = vmatpush1.msra.mxu0 0.0
  %369 = vmatprep.subr.mxu0 0.0
  %370 = vmatpush1.msra.mxu0 0.0
  %371 = vmatprep.subr.mxu0 0.0
  %372 = vmatpush1.msra.mxu0 0.0
  %373 = vmatprep.subr.mxu0 0.0
  %374 = vmatpush1.msra.mxu0 0.0
  %375 = vmatprep.subr.mxu0 0.0
  %376 = vmatpush1.msra.mxu0 0.0
  %377 = vmatprep.subr.mxu0 0.0
  %378 = vmatpush1.msra.mxu0 0.0
  %379 = vmatprep.subr.mxu0 0.0
  %380 = vmatpush1.msra.mxu0 0.0
  %381 = vmatprep.subr.mxu0 0.0
  %382 = vmatpush1.msra.mxu0 0.0
  %383 = vmatprep.subr.mxu0 0.0
  %384 = vmatpush1.msra.mxu0 0.0
  %385 = vmatprep.subr.mxu0 0.0
  %386 = vmatpush1.msra.mxu0 0.0
  %387 = vmatprep.subr.mxu0 0.0
  %388 = vmatpush1.msra.mxu0 0.0
  %389 = vmatprep.subr.mxu0 0.0
  %390 = vmatpush1.msra.mxu0 0.0
  %391 = vmatprep.subr.mxu0 0.0
  %392 = vmatpush1.msra.mxu0 0.0
  %393 = vmatprep.subr.mxu0 0.0
  %394 = vmatpush1.msra.mxu0 0.0
  %395 = vmatprep.subr.mxu0 0.0
  %396 = vmatpush1.msra.mxu0 0.0
  %397 = vmatprep.subr.mxu0 0.0
  %398 = vmatpush1.msra.mxu0 0.0
  %399 = vmatprep.subr.mxu0 0.0
  %400 = vmatpush1.msra.mxu0 0.0
  %401 = vmatprep.subr.mxu0 0.0
  %402 = vmatpush1.msra.mxu0 0.0
  %403 = vmatprep.subr.mxu0 0.0
  %404 = vmatpush1.msra.mxu0 0.0
  %405 = vmatprep.subr.mxu0 0.0
  %406 = vmatpush1.msra.mxu0 0.0
  %407 = vmatprep.subr.mxu0 0.0
  %408 = vmatpush1.msra.mxu0 0.0
  %409 = vmatprep.subr.mxu0 0.0
  %410 = vmatpush1.msra.mxu0 0.0
  %411 = vmatprep.subr.mxu0 0.0
  %412 = vmatpush1.msra.mxu0 0.0
  %413 = vmatprep.subr.mxu0 0.0
  %414 = vmatpush1.msra.mxu0 0.0
  %415 = vmatprep.subr.mxu0 0.0
  %416 = vmatpush1.msra.mxu0 0.0
  %417 = vmatprep.subr.mxu0 0.0
  %418 = vmatpush1.msra.mxu0 0.0
  %419 = vmatprep.subr.mxu0 0.0
  %420 = vmatpush1.msra.mxu0 0.0
  %421 = vmatprep.subr.mxu0 0.0
  %422 = vmatpush1.msra.mxu0 0.0
  %423 = vmatprep.subr.mxu0 0.0
  %424 = vmatpush1.msra.mxu0 0.0
  %425 = vmatprep.mubr.f32.mxu0 0.0
  %426 = vmatmul.mubr.f32.gmra.mrb[0].mxu0 %v356
  %v427 = vpop.f32.mrb[0].mxu0
  %v428 = vadd.f32 0.0, %v427
  %v429 = vpop.f32.mrb[0].mxu0
  %430 = vmatprep.mubr.f32.mxu0 0.0
  %431 = vmatmul.mubr.f32.gmra.mrb[0].mxu0 %v359
  %v432 = vpop.f32.mrb[0].mxu0
  %v433 = vadd.f32 0.0, %v432
  %v434 = vpop.f32.mrb[0].mxu0
  %435 = vdwg.mxu0
  %436 = vrot.lane.b32.xlu0 %v190, 64
  %v437 = vpop.permute.xlu0 %436
  %438 = vrot.lane.b32.xlu0 %v195, 64
  %v439 = vpop.permute.xlu0 %438
  %440 = vrot.lane.b32.xlu0 %v201, 64
  %v441 = vpop.permute.xlu0 %440
  %442 = vrot.lane.b32.xlu0 %v203, 64
  %v443 = vpop.permute.xlu0 %442
  %444 = vrot.lane.b32.xlu0 %v190, 32
  %v445 = vpop.permute.xlu0 %444
  %446 = vrot.lane.b32.xlu0 %v195, 32
  %v447 = vpop.permute.xlu0 %446
  %v448 = vsel %vm116, %v437, 0
  %v450 = vsel %vm116, %v439, 0
  %v452 = vsel %vm116, %v441, 0
  %v454 = vsel %vm116, %v443, 0
  %v456 = vsel %vm116, %v445, 0
  %v458 = vsel %vm116, %v447, 0
  %460 = vmatprep.subr.mxu0 0.0
  %461 = vmatpush1.xpose.msra.mxu0 %v456
  %462 = vmatprep.subr.mxu0 0.0
  %463 = vmatpush1.xpose.msra.mxu0 %v458
  %464 = vmatprep.subr.mxu0 0.0
  %465 = vmatpush1.xpose.msra.mxu0 0.0
  %466 = vmatprep.subr.mxu0 0.0
  %467 = vmatpush1.xpose.msra.mxu0 0.0
  %468 = vmatprep.subr.mxu0 0.0
  %469 = vmatpush1.xpose.msra.mxu0 0.0
  %470 = vmatprep.subr.mxu0 0.0
  %471 = vmatpush1.xpose.msra.mxu0 0.0
  %472 = vmatprep.subr.mxu0 0.0
  %473 = vmatpush1.xpose.msra.mxu0 0.0
  %474 = vmatprep.subr.mxu0 0.0
  %475 = vmatpush1.xpose.msra.mxu0 0.0
  %476 = vmatprep.subr.mxu0 0.0
  %477 = vmatpush1.xpose.msra.mxu0 0.0
  %478 = vmatprep.subr.mxu0 0.0
  %479 = vmatpush1.xpose.msra.mxu0 0.0
  %480 = vmatprep.subr.mxu0 0.0
  %481 = vmatpush1.xpose.msra.mxu0 0.0
  %482 = vmatprep.subr.mxu0 0.0
  %483 = vmatpush1.xpose.msra.mxu0 0.0
  %484 = vmatprep.subr.mxu0 0.0
  %485 = vmatpush1.xpose.msra.mxu0 0.0
  %486 = vmatprep.subr.mxu0 0.0
  %487 = vmatpush1.xpose.msra.mxu0 0.0
  %488 = vmatprep.subr.mxu0 0.0
  %489 = vmatpush1.xpose.msra.mxu0 0.0
  %490 = vmatprep.subr.mxu0 0.0
  %491 = vmatpush1.xpose.msra.mxu0 0.0
  %492 = vmatprep.subr.mxu0 0.0
  %493 = vmatpush1.xpose.msra.mxu0 0.0
  %494 = vmatprep.subr.mxu0 0.0
  %495 = vmatpush1.xpose.msra.mxu0 0.0
  %496 = vmatprep.subr.mxu0 0.0
  %497 = vmatpush1.xpose.msra.mxu0 0.0
  %498 = vmatprep.subr.mxu0 0.0
  %499 = vmatpush1.xpose.msra.mxu0 0.0
  %500 = vmatprep.subr.mxu0 0.0
  %501 = vmatpush1.xpose.msra.mxu0 0.0
  %502 = vmatprep.subr.mxu0 0.0
  %503 = vmatpush1.xpose.msra.mxu0 0.0
  %504 = vmatprep.subr.mxu0 0.0
  %505 = vmatpush1.xpose.msra.mxu0 0.0
  %506 = vmatprep.subr.mxu0 0.0
  %507 = vmatpush1.xpose.msra.mxu0 0.0
  %508 = vmatprep.subr.mxu0 0.0
  %509 = vmatpush1.xpose.msra.mxu0 0.0
  %510 = vmatprep.subr.mxu0 0.0
  %511 = vmatpush1.xpose.msra.mxu0 0.0
  %512 = vmatprep.subr.mxu0 0.0
  %513 = vmatpush1.xpose.msra.mxu0 0.0
  %514 = vmatprep.subr.mxu0 0.0
  %515 = vmatpush1.xpose.msra.mxu0 0.0
  %516 = vmatprep.subr.mxu0 0.0
  %517 = vmatpush1.xpose.msra.mxu0 0.0
  %518 = vmatprep.subr.mxu0 0.0
  %519 = vmatpush1.xpose.msra.mxu0 0.0
  %520 = vmatprep.subr.mxu0 0.0
  %521 = vmatpush1.xpose.msra.mxu0 0.0
  %522 = vmatprep.subr.mxu0 0.0
  %523 = vmatpush1.xpose.msra.mxu0 0.0
  %524 = vmatprep.mubr.f32.mxu0 0.0
  %525 = vmatmul.mubr.f32.gmra.mrb[0].mxu0 %v448
  %v526 = vpop.f32.mrb[0].mxu0
  %v527 = vadd.f32 0.0, %v526
  %v528 = vpop.f32.mrb[0].mxu0
  %529 = vmatprep.mubr.f32.mxu0 0.0
  %530 = vmatmul.mubr.f32.gmra.mrb[0].mxu0 %v450
  %v531 = vpop.f32.mrb[0].mxu0
  %v532 = vadd.f32 0.0, %v531
  %v533 = vpop.f32.mrb[0].mxu0
  %534 = vmatprep.mubr.f32.mxu0 0.0
  %535 = vmatmul.mubr.f32.gmra.mrb[0].mxu0 %v452
  %v536 = vpop.f32.mrb[0].mxu0
  %v537 = vadd.f32 0.0, %v536
  %v538 = vpop.f32.mrb[0].mxu0
  %539 = vmatprep.mubr.f32.mxu0 0.0
  %540 = vmatmul.mubr.f32.gmra.mrb[0].mxu0 %v454
  %v541 = vpop.f32.mrb[0].mxu0
  %v542 = vadd.f32 0.0, %v541
  %v543 = vpop.f32.mrb[0].mxu0
  %544 = vdwg.mxu0
  %v545 = vmul.f32 %v527, %v527
  %v546 = vmul.f32 %v532, %v532
  %v547 = vmul.f32 %v537, %v537
  %v548 = vmul.f32 %v542, %v542
  %v549 = vadd.f32 %v545, %v547
  %v550 = vadd.f32 %v546, %v548
  %v551 = vrsqrt.pop %v549
  %v552 = vmul.f32 %v549, %v551
  %vm553 = vcmp.eq.f32.partialorder %v549, inf
  %v554 = vsel %vm553, %v549, %v552
  %vm555 = vcmp.eq.f32.partialorder %v549, 0.0
  %v556 = vand.u32 %v549, 2147483648
  %v557 = vsel %vm555, %v556, %v554
  %v558 = vrsqrt.pop %v550
  %v559 = vmul.f32 %v550, %v558
  %vm560 = vcmp.eq.f32.partialorder %v550, inf
  %v561 = vsel %vm560, %v550, %v559
  %vm562 = vcmp.eq.f32.partialorder %v550, 0.0
  %v563 = vand.u32 %v550, 2147483648
  %v564 = vsel %vm562, %v563, %v561
  %v565 = vadd.f32 %v557, %v27
  %v566 = vadd.f32 %v564, %v28
  %v567 = vsel %vm116, %v565, -inf
  %568 = vmax.xlane.f32.xlu0 %v567
  %v569 = vpop.xlane.xlu0 %568
  %v570 = vsel %vm116, %v566, -inf
  %571 = vmax.xlane.f32.xlu0 %v570
  %v572 = vpop.xlane.xlu0 %571
  %v573 = vsub.f32 %v565, %v569
  %v574 = vsub.f32 %v566, %v572
  %v575 = vmul.f32 %v573, 1.442695
  %v576 = vpow.pop %v575
  %v577 = vmul.f32 %v574, 1.442695
  %v578 = vpow.pop %v577
  %v579 = vsel %vm116, %v576, 0.0
  %580 = vadd.xlane.f32.xlu0 %v579
  %v581 = vpop.xlane.xlu0 %580
  %v582 = vsel %vm116, %v578, 0.0
  %583 = vadd.xlane.f32.xlu0 %v582
  %v584 = vpop.xlane.xlu0 %583
  %v585 = vrcp.pop %v581
  %v586 = vrcp.pop %v584
  %v587 = vmul.f32 %v576, %v585
  %v588 = vmul.f32 %v578, %v586
  %589 = vrot.lane.b32.xlu0 %v190, 16
  %v590 = vpop.permute.xlu0 %589
  %591 = vrot.lane.b32.xlu0 %v195, 16
  %v592 = vpop.permute.xlu0 %591
  %v596 = vsel %vm116, %v587, 0
  %v599 = vsel %vm116, %v588, 0
  %601 = vmatprep.subr.mxu0 0.0
  %602 = vmatpush1.msra.mxu0 %v590
  %603 = vmatprep.subr.mxu0 0.0
  %604 = vmatpush1.msra.mxu0 %v592
  %605 = vmatprep.subr.mxu0 0.0
  %606 = vmatpush1.msra.mxu0 0.0
  %607 = vmatprep.subr.mxu0 0.0
  %608 = vmatpush1.msra.mxu0 0.0
  %609 = vmatprep.subr.mxu0 0.0
  %610 = vmatpush1.msra.mxu0 0.0
  %611 = vmatprep.subr.mxu0 0.0
  %612 = vmatpush1.msra.mxu0 0.0
  %613 = vmatprep.subr.mxu0 0.0
  %614 = vmatpush1.msra.mxu0 0.0
  %615 = vmatprep.subr.mxu0 0.0
  %616 = vmatpush1.msra.mxu0 0.0
  %617 = vmatprep.subr.mxu0 0.0
  %618 = vmatpush1.msra.mxu0 0.0
  %619 = vmatprep.subr.mxu0 0.0
  %620 = vmatpush1.msra.mxu0 0.0
  %621 = vmatprep.subr.mxu0 0.0
  %622 = vmatpush1.msra.mxu0 0.0
  %623 = vmatprep.subr.mxu0 0.0
  %624 = vmatpush1.msra.mxu0 0.0
  %625 = vmatprep.subr.mxu0 0.0
  %626 = vmatpush1.msra.mxu0 0.0
  %627 = vmatprep.subr.mxu0 0.0
  %628 = vmatpush1.msra.mxu0 0.0
  %629 = vmatprep.subr.mxu0 0.0
  %630 = vmatpush1.msra.mxu0 0.0
  %631 = vmatprep.subr.mxu0 0.0
  %632 = vmatpush1.msra.mxu0 0.0
  %633 = vmatprep.subr.mxu0 0.0
  %634 = vmatpush1.msra.mxu0 0.0
  %635 = vmatprep.subr.mxu0 0.0
  %636 = vmatpush1.msra.mxu0 0.0
  %637 = vmatprep.subr.mxu0 0.0
  %638 = vmatpush1.msra.mxu0 0.0
  %639 = vmatprep.subr.mxu0 0.0
  %640 = vmatpush1.msra.mxu0 0.0
  %641 = vmatprep.subr.mxu0 0.0
  %642 = vmatpush1.msra.mxu0 0.0
  %643 = vmatprep.subr.mxu0 0.0
  %644 = vmatpush1.msra.mxu0 0.0
  %645 = vmatprep.subr.mxu0 0.0
  %646 = vmatpush1.msra.mxu0 0.0
  %647 = vmatprep.subr.mxu0 0.0
  %648 = vmatpush1.msra.mxu0 0.0
  %649 = vmatprep.subr.mxu0 0.0
  %650 = vmatpush1.msra.mxu0 0.0
  %651 = vmatprep.subr.mxu0 0.0
  %652 = vmatpush1.msra.mxu0 0.0
  %653 = vmatprep.subr.mxu0 0.0
  %654 = vmatpush1.msra.mxu0 0.0
  %655 = vmatprep.subr.mxu0 0.0
  %656 = vmatpush1.msra.mxu0 0.0
  %657 = vmatprep.subr.mxu0 0.0
  %658 = vmatpush1.msra.mxu0 0.0
  %659 = vmatprep.subr.mxu0 0.0
  %660 = vmatpush1.msra.mxu0 0.0
  %661 = vmatprep.subr.mxu0 0.0
  %662 = vmatpush1.msra.mxu0 0.0
  %663 = vmatprep.subr.mxu0 0.0
  %664 = vmatpush1.msra.mxu0 0.0
  %665 = vmatprep.mubr.f32.mxu0 0.0
  %666 = vmatmul.mubr.f32.gmra.mrb[0].mxu0 %v596
  %v667 = vpop.f32.mrb[0].mxu0
  %v668 = vadd.f32 0.0, %v667
  %v669 = vpop.f32.mrb[0].mxu0
  %670 = vmatprep.mubr.f32.mxu0 0.0
  %671 = vmatmul.mubr.f32.gmra.mrb[0].mxu0 %v599
  %v672 = vpop.f32.mrb[0].mxu0
  %v673 = vadd.f32 0.0, %v672
  %v674 = vpop.f32.mrb[0].mxu0
  %675 = vdwg.mxu0
  %678 = vrot.lane.b32.xlu0 %v668, 16
  %v679 = vpop.permute.xlu0 %678
  %680 = vrot.lane.b32.xlu0 %v673, 16
  %v681 = vpop.permute.xlu0 %680
  %v684 = vsel %vm116, %v428, %v679
  %v685 = vsel %vm116, %v433, %v681
  %v686 = vld [vmem:[%s3] sm:$0xff]
  %v687 = vld [vmem:[%s3 + $0x8] sm:$0xff]
  %v688 = vld [vmem:[%s3 + $0x10] sm:$0xff]
  %v689 = vld [vmem:[%s3 + $0x18] sm:$0xff]
  %vm690 = vcmask 261120
  %v692 = vsel %vm690, %v684, 0
  %v695 = vsel %vm690, %v685, 0
  %697 = vmatprep.subr.mxu0 0.0
  %698 = vmatpush1.msra.mxu0 %v686
  %699 = vmatprep.subr.mxu0 0.0
  %700 = vmatpush1.msra.mxu0 %v687
  %701 = vmatprep.subr.mxu0 0.0
  %702 = vmatpush1.msra.mxu0 %v688
  %703 = vmatprep.subr.mxu0 0.0
  %704 = vmatpush1.msra.mxu0 %v689
  %705 = vmatprep.subr.mxu0 0.0
  %706 = vmatpush1.msra.mxu0 0.0
  %707 = vmatprep.subr.mxu0 0.0
  %708 = vmatpush1.msra.mxu0 0.0
  %709 = vmatprep.subr.mxu0 0.0
  %710 = vmatpush1.msra.mxu0 0.0
  %711 = vmatprep.subr.mxu0 0.0
  %712 = vmatpush1.msra.mxu0 0.0
  %713 = vmatprep.subr.mxu0 0.0
  %714 = vmatpush1.msra.mxu0 0.0
  %715 = vmatprep.subr.mxu0 0.0
  %716 = vmatpush1.msra.mxu0 0.0
  %717 = vmatprep.subr.mxu0 0.0
  %718 = vmatpush1.msra.mxu0 0.0
  %719 = vmatprep.subr.mxu0 0.0
  %720 = vmatpush1.msra.mxu0 0.0
  %721 = vmatprep.subr.mxu0 0.0
  %722 = vmatpush1.msra.mxu0 0.0
  %723 = vmatprep.subr.mxu0 0.0
  %724 = vmatpush1.msra.mxu0 0.0
  %725 = vmatprep.subr.mxu0 0.0
  %726 = vmatpush1.msra.mxu0 0.0
  %727 = vmatprep.subr.mxu0 0.0
  %728 = vmatpush1.msra.mxu0 0.0
  %729 = vmatprep.subr.mxu0 0.0
  %730 = vmatpush1.msra.mxu0 0.0
  %731 = vmatprep.subr.mxu0 0.0
  %732 = vmatpush1.msra.mxu0 0.0
  %733 = vmatprep.subr.mxu0 0.0
  %734 = vmatpush1.msra.mxu0 0.0
  %735 = vmatprep.subr.mxu0 0.0
  %736 = vmatpush1.msra.mxu0 0.0
  %737 = vmatprep.subr.mxu0 0.0
  %738 = vmatpush1.msra.mxu0 0.0
  %739 = vmatprep.subr.mxu0 0.0
  %740 = vmatpush1.msra.mxu0 0.0
  %741 = vmatprep.subr.mxu0 0.0
  %742 = vmatpush1.msra.mxu0 0.0
  %743 = vmatprep.subr.mxu0 0.0
  %744 = vmatpush1.msra.mxu0 0.0
  %745 = vmatprep.subr.mxu0 0.0
  %746 = vmatpush1.msra.mxu0 0.0
  %747 = vmatprep.subr.mxu0 0.0
  %748 = vmatpush1.msra.mxu0 0.0
  %749 = vmatprep.subr.mxu0 0.0
  %750 = vmatpush1.msra.mxu0 0.0
  %751 = vmatprep.subr.mxu0 0.0
  %752 = vmatpush1.msra.mxu0 0.0
  %753 = vmatprep.subr.mxu0 0.0
  %754 = vmatpush1.msra.mxu0 0.0
  %755 = vmatprep.subr.mxu0 0.0
  %756 = vmatpush1.msra.mxu0 0.0
  %757 = vmatprep.subr.mxu0 0.0
  %758 = vmatpush1.msra.mxu0 0.0
  %759 = vmatprep.subr.mxu0 0.0
  %760 = vmatpush1.msra.mxu0 0.0
  %761 = vmatprep.mubr.f32.mxu0 0.0
  %762 = vmatmul.mubr.f32.gmra.mrb[0].mxu0 %v692
  %v763 = vpop.f32.mrb[0].mxu0
  %v764 = vadd.f32 0.0, %v763
  %v765 = vpop.f32.mrb[0].mxu0
  %766 = vmatprep.mubr.f32.mxu0 0.0
  %767 = vmatmul.mubr.f32.gmra.mrb[0].mxu0 %v695
  %v768 = vpop.f32.mrb[0].mxu0
  %v769 = vadd.f32 0.0, %v768
  %v770 = vpop.f32.mrb[0].mxu0
  %771 = vdwg.mxu0
  %s772 = scalar_lea.vmem %s2, 16
  %v773 = vld [vmem:[%s772] sm:$0xff]
  %v774 = vld [vmem:[%s772 + $0x8] sm:$0xff]
  %v776 = vsel %vm116, %v764, 0
  %v779 = vsel %vm116, %v769, 0
  %781 = vmatprep.subr.mxu0 0.0
  %782 = vmatpush1.msra.mxu0 %v773
  %783 = vmatprep.subr.mxu0 0.0
  %784 = vmatpush1.msra.mxu0 %v774
  %785 = vmatprep.subr.mxu0 0.0
  %786 = vmatpush1.msra.mxu0 0.0
  %787 = vmatprep.subr.mxu0 0.0
  %788 = vmatpush1.msra.mxu0 0.0
  %789 = vmatprep.subr.mxu0 0.0
  %790 = vmatpush1.msra.mxu0 0.0
  %791 = vmatprep.subr.mxu0 0.0
  %792 = vmatpush1.msra.mxu0 0.0
  %793 = vmatprep.subr.mxu0 0.0
  %794 = vmatpush1.msra.mxu0 0.0
  %795 = vmatprep.subr.mxu0 0.0
  %796 = vmatpush1.msra.mxu0 0.0
  %797 = vmatprep.subr.mxu0 0.0
  %798 = vmatpush1.msra.mxu0 0.0
  %799 = vmatprep.subr.mxu0 0.0
  %800 = vmatpush1.msra.mxu0 0.0
  %801 = vmatprep.subr.mxu0 0.0
  %802 = vmatpush1.msra.mxu0 0.0
  %803 = vmatprep.subr.mxu0 0.0
  %804 = vmatpush1.msra.mxu0 0.0
  %805 = vmatprep.subr.mxu0 0.0
  %806 = vmatpush1.msra.mxu0 0.0
  %807 = vmatprep.subr.mxu0 0.0
  %808 = vmatpush1.msra.mxu0 0.0
  %809 = vmatprep.subr.mxu0 0.0
  %810 = vmatpush1.msra.mxu0 0.0
  %811 = vmatprep.subr.mxu0 0.0
  %812 = vmatpush1.msra.mxu0 0.0
  %813 = vmatprep.subr.mxu0 0.0
  %814 = vmatpush1.msra.mxu0 0.0
  %815 = vmatprep.subr.mxu0 0.0
  %816 = vmatpush1.msra.mxu0 0.0
  %817 = vmatprep.subr.mxu0 0.0
  %818 = vmatpush1.msra.mxu0 0.0
  %819 = vmatprep.subr.mxu0 0.0
  %820 = vmatpush1.msra.mxu0 0.0
  %821 = vmatprep.subr.mxu0 0.0
  %822 = vmatpush1.msra.mxu0 0.0
  %823 = vmatprep.subr.mxu0 0.0
  %824 = vmatpush1.msra.mxu0 0.0
  %825 = vmatprep.subr.mxu0 0.0
  %826 = vmatpush1.msra.mxu0 0.0
  %827 = vmatprep.subr.mxu0 0.0
  %828 = vmatpush1.msra.mxu0 0.0
  %829 = vmatprep.subr.mxu0 0.0
  %830 = vmatpush1.msra.mxu0 0.0
  %831 = vmatprep.subr.mxu0 0.0
  %832 = vmatpush1.msra.mxu0 0.0
  %833 = vmatprep.subr.mxu0 0.0
  %834 = vmatpush1.msra.mxu0 0.0
  %835 = vmatprep.subr.mxu0 0.0
  %836 = vmatpush1.msra.mxu0 0.0
  %837 = vmatprep.subr.mxu0 0.0
  %838 = vmatpush1.msra.mxu0 0.0
  %839 = vmatprep.subr.mxu0 0.0
  %840 = vmatpush1.msra.mxu0 0.0
  %841 = vmatprep.subr.mxu0 0.0
  %842 = vmatpush1.msra.mxu0 0.0
  %843 = vmatprep.subr.mxu0 0.0
  %844 = vmatpush1.msra.mxu0 0.0
  %845 = vmatprep.mubr.f32.mxu0 0.0
  %846 = vmatmul.mubr.f32.gmra.mrb[0].mxu0 %v776
  %v847 = vpop.f32.mrb[0].mxu0
  %v848 = vadd.f32 0.0, %v847
  %v849 = vpop.f32.mrb[0].mxu0
  %850 = vmatprep.mubr.f32.mxu0 0.0
  %851 = vmatmul.mubr.f32.gmra.mrb[0].mxu0 %v779
  %v852 = vpop.f32.mrb[0].mxu0
  %v853 = vadd.f32 0.0, %v852
  %v854 = vpop.f32.mrb[0].mxu0
  %855 = vdwg.mxu0
  %858 = vrot.lane.b32.xlu0 %v848, 112
  %v859 = vpop.permute.xlu0 %858
  %860 = vrot.lane.b32.xlu0 %v853, 112
  %v861 = vpop.permute.xlu0 %860
  %862 = vrot.lane.b32.xlu0 %v848, 96
  %v863 = vpop.permute.xlu0 %862
  %864 = vrot.lane.b32.xlu0 %v853, 96
  %v865 = vpop.permute.xlu0 %864
  %v866 = vsel %vm116, %v848, 0
  %v868 = vsel %vm116, %v853, 0
  %v870 = vsel %vm116, %v859, 0
  %v872 = vsel %vm116, %v861, 0
  %v874 = vsel %vm116, %v863, 0
  %v876 = vsel %vm116, %v865, 0
  %878 = vmatprep.subr.mxu0 0.0
  %879 = vmatpush1.xpose.msra.mxu0 %v874
  %880 = vmatprep.subr.mxu0 0.0
  %881 = vmatpush1.xpose.msra.mxu0 %v876
  %882 = vmatprep.subr.mxu0 0.0
  %883 = vmatpush1.xpose.msra.mxu0 0.0
  %884 = vmatprep.subr.mxu0 0.0
  %885 = vmatpush1.xpose.msra.mxu0 0.0
  %886 = vmatprep.subr.mxu0 0.0
  %887 = vmatpush1.xpose.msra.mxu0 0.0
  %888 = vmatprep.subr.mxu0 0.0
  %889 = vmatpush1.xpose.msra.mxu0 0.0
  %890 = vmatprep.subr.mxu0 0.0
  %891 = vmatpush1.xpose.msra.mxu0 0.0
  %892 = vmatprep.subr.mxu0 0.0
  %893 = vmatpush1.xpose.msra.mxu0 0.0
  %894 = vmatprep.subr.mxu0 0.0
  %895 = vmatpush1.xpose.msra.mxu0 0.0
  %896 = vmatprep.subr.mxu0 0.0
  %897 = vmatpush1.xpose.msra.mxu0 0.0
  %898 = vmatprep.subr.mxu0 0.0
  %899 = vmatpush1.xpose.msra.mxu0 0.0
  %900 = vmatprep.subr.mxu0 0.0
  %901 = vmatpush1.xpose.msra.mxu0 0.0
  %902 = vmatprep.subr.mxu0 0.0
  %903 = vmatpush1.xpose.msra.mxu0 0.0
  %904 = vmatprep.subr.mxu0 0.0
  %905 = vmatpush1.xpose.msra.mxu0 0.0
  %906 = vmatprep.subr.mxu0 0.0
  %907 = vmatpush1.xpose.msra.mxu0 0.0
  %908 = vmatprep.subr.mxu0 0.0
  %909 = vmatpush1.xpose.msra.mxu0 0.0
  %910 = vmatprep.subr.mxu0 0.0
  %911 = vmatpush1.xpose.msra.mxu0 0.0
  %912 = vmatprep.subr.mxu0 0.0
  %913 = vmatpush1.xpose.msra.mxu0 0.0
  %914 = vmatprep.subr.mxu0 0.0
  %915 = vmatpush1.xpose.msra.mxu0 0.0
  %916 = vmatprep.subr.mxu0 0.0
  %917 = vmatpush1.xpose.msra.mxu0 0.0
  %918 = vmatprep.subr.mxu0 0.0
  %919 = vmatpush1.xpose.msra.mxu0 0.0
  %920 = vmatprep.subr.mxu0 0.0
  %921 = vmatpush1.xpose.msra.mxu0 0.0
  %922 = vmatprep.subr.mxu0 0.0
  %923 = vmatpush1.xpose.msra.mxu0 0.0
  %924 = vmatprep.subr.mxu0 0.0
  %925 = vmatpush1.xpose.msra.mxu0 0.0
  %926 = vmatprep.subr.mxu0 0.0
  %927 = vmatpush1.xpose.msra.mxu0 0.0
  %928 = vmatprep.subr.mxu0 0.0
  %929 = vmatpush1.xpose.msra.mxu0 0.0
  %930 = vmatprep.subr.mxu0 0.0
  %931 = vmatpush1.xpose.msra.mxu0 0.0
  %932 = vmatprep.subr.mxu0 0.0
  %933 = vmatpush1.xpose.msra.mxu0 0.0
  %934 = vmatprep.subr.mxu0 0.0
  %935 = vmatpush1.xpose.msra.mxu0 0.0
  %936 = vmatprep.subr.mxu0 0.0
  %937 = vmatpush1.xpose.msra.mxu0 0.0
  %938 = vmatprep.subr.mxu0 0.0
  %939 = vmatpush1.xpose.msra.mxu0 0.0
  %940 = vmatprep.subr.mxu0 0.0
  %941 = vmatpush1.xpose.msra.mxu0 0.0
  %942 = vmatprep.mubr.f32.mxu0 0.0
  %943 = vmatmul.mubr.f32.gmra.mrb[0].mxu0 %v866
  %v944 = vpop.f32.mrb[0].mxu0
  %v945 = vadd.f32 0.0, %v944
  %v946 = vpop.f32.mrb[0].mxu0
  %947 = vmatprep.mubr.f32.mxu0 0.0
  %948 = vmatmul.mubr.f32.gmra.mrb[0].mxu0 %v868
  %v949 = vpop.f32.mrb[0].mxu0
  %v950 = vadd.f32 0.0, %v949
  %v951 = vpop.f32.mrb[0].mxu0
  %952 = vmatprep.mubr.f32.mxu0 0.0
  %953 = vmatmul.mubr.f32.gmra.mrb[0].mxu0 %v870
  %v954 = vpop.f32.mrb[0].mxu0
  %v955 = vadd.f32 0.0, %v954
  %v956 = vpop.f32.mrb[0].mxu0
  %957 = vmatprep.mubr.f32.mxu0 0.0
  %958 = vmatmul.mubr.f32.gmra.mrb[0].mxu0 %v872
  %v959 = vpop.f32.mrb[0].mxu0
  %v960 = vadd.f32 0.0, %v959
  %v961 = vpop.f32.mrb[0].mxu0
  %962 = vdwg.mxu0
  %v963 = vmul.f32 %v945, %v945
  %v964 = vmul.f32 %v950, %v950
  %v965 = vmul.f32 %v955, %v955
  %v966 = vmul.f32 %v960, %v960
  %v967 = vadd.f32 %v963, %v965
  %v968 = vadd.f32 %v964, %v966
  %v969 = vrsqrt.pop %v967
  %v970 = vmul.f32 %v967, %v969
  %vm971 = vcmp.eq.f32.partialorder %v967, inf
  %v972 = vsel %vm971, %v967, %v970
  %vm973 = vcmp.eq.f32.partialorder %v967, 0.0
  %v974 = vand.u32 %v967, 2147483648
  %v975 = vsel %vm973, %v974, %v972
  %v976 = vrsqrt.pop %v968
  %v977 = vmul.f32 %v968, %v976
  %vm978 = vcmp.eq.f32.partialorder %v968, inf
  %v979 = vsel %vm978, %v968, %v977
  %vm980 = vcmp.eq.f32.partialorder %v968, 0.0
  %v981 = vand.u32 %v968, 2147483648
  %v982 = vsel %vm980, %v981, %v979
  %v983 = vadd.f32 %v975, %v27
  %v984 = vadd.f32 %v982, %v28
  %v985 = vsel %vm116, %v983, -inf
  %986 = vmax.xlane.f32.xlu0 %v985
  %v987 = vpop.xlane.xlu0 %986
  %v988 = vsel %vm116, %v984, -inf
  %989 = vmax.xlane.f32.xlu0 %v988
  %v990 = vpop.xlane.xlu0 %989
  %v991 = vsub.f32 %v983, %v987
  %v992 = vsub.f32 %v984, %v990
  %v993 = vmul.f32 %v991, 1.442695
  %v994 = vpow.pop %v993
  %v995 = vmul.f32 %v992, 1.442695
  %v996 = vpow.pop %v995
  %v997 = vsel %vm116, %v994, 0.0
  %998 = vadd.xlane.f32.xlu0 %v997
  %v999 = vpop.xlane.xlu0 %998
  %v1000 = vsel %vm116, %v996, 0.0
  %1001 = vadd.xlane.f32.xlu0 %v1000
  %v1002 = vpop.xlane.xlu0 %1001
  %v1003 = vrcp.pop %v999
  %v1004 = vrcp.pop %v1002
  %v1005 = vmul.f32 %v994, %v1003
  %v1006 = vmul.f32 %v996, %v1004
  %1007 = vrot.lane.b32.xlu0 %v848, 80
  %v1008 = vpop.permute.xlu0 %1007
  %1009 = vrot.lane.b32.xlu0 %v853, 80
  %v1010 = vpop.permute.xlu0 %1009
  %v1014 = vsel %vm116, %v1005, 0
  %v1017 = vsel %vm116, %v1006, 0
  %1019 = vmatprep.subr.mxu0 0.0
  %1020 = vmatpush1.msra.mxu0 %v1008
  %1021 = vmatprep.subr.mxu0 0.0
  %1022 = vmatpush1.msra.mxu0 %v1010
  %1023 = vmatprep.subr.mxu0 0.0
  %1024 = vmatpush1.msra.mxu0 0.0
  %1025 = vmatprep.subr.mxu0 0.0
  %1026 = vmatpush1.msra.mxu0 0.0
  %1027 = vmatprep.subr.mxu0 0.0
  %1028 = vmatpush1.msra.mxu0 0.0
  %1029 = vmatprep.subr.mxu0 0.0
  %1030 = vmatpush1.msra.mxu0 0.0
  %1031 = vmatprep.subr.mxu0 0.0
  %1032 = vmatpush1.msra.mxu0 0.0
  %1033 = vmatprep.subr.mxu0 0.0
  %1034 = vmatpush1.msra.mxu0 0.0
  %1035 = vmatprep.subr.mxu0 0.0
  %1036 = vmatpush1.msra.mxu0 0.0
  %1037 = vmatprep.subr.mxu0 0.0
  %1038 = vmatpush1.msra.mxu0 0.0
  %1039 = vmatprep.subr.mxu0 0.0
  %1040 = vmatpush1.msra.mxu0 0.0
  %1041 = vmatprep.subr.mxu0 0.0
  %1042 = vmatpush1.msra.mxu0 0.0
  %1043 = vmatprep.subr.mxu0 0.0
  %1044 = vmatpush1.msra.mxu0 0.0
  %1045 = vmatprep.subr.mxu0 0.0
  %1046 = vmatpush1.msra.mxu0 0.0
  %1047 = vmatprep.subr.mxu0 0.0
  %1048 = vmatpush1.msra.mxu0 0.0
  %1049 = vmatprep.subr.mxu0 0.0
  %1050 = vmatpush1.msra.mxu0 0.0
  %1051 = vmatprep.subr.mxu0 0.0
  %1052 = vmatpush1.msra.mxu0 0.0
  %1053 = vmatprep.subr.mxu0 0.0
  %1054 = vmatpush1.msra.mxu0 0.0
  %1055 = vmatprep.subr.mxu0 0.0
  %1056 = vmatpush1.msra.mxu0 0.0
  %1057 = vmatprep.subr.mxu0 0.0
  %1058 = vmatpush1.msra.mxu0 0.0
  %1059 = vmatprep.subr.mxu0 0.0
  %1060 = vmatpush1.msra.mxu0 0.0
  %1061 = vmatprep.subr.mxu0 0.0
  %1062 = vmatpush1.msra.mxu0 0.0
  %1063 = vmatprep.subr.mxu0 0.0
  %1064 = vmatpush1.msra.mxu0 0.0
  %1065 = vmatprep.subr.mxu0 0.0
  %1066 = vmatpush1.msra.mxu0 0.0
  %1067 = vmatprep.subr.mxu0 0.0
  %1068 = vmatpush1.msra.mxu0 0.0
  %1069 = vmatprep.subr.mxu0 0.0
  %1070 = vmatpush1.msra.mxu0 0.0
  %1071 = vmatprep.subr.mxu0 0.0
  %1072 = vmatpush1.msra.mxu0 0.0
  %1073 = vmatprep.subr.mxu0 0.0
  %1074 = vmatpush1.msra.mxu0 0.0
  %1075 = vmatprep.subr.mxu0 0.0
  %1076 = vmatpush1.msra.mxu0 0.0
  %1077 = vmatprep.subr.mxu0 0.0
  %1078 = vmatpush1.msra.mxu0 0.0
  %1079 = vmatprep.subr.mxu0 0.0
  %1080 = vmatpush1.msra.mxu0 0.0
  %1081 = vmatprep.subr.mxu0 0.0
  %1082 = vmatpush1.msra.mxu0 0.0
  %1083 = vmatprep.mubr.f32.mxu0 0.0
  %1084 = vmatmul.mubr.f32.gmra.mrb[0].mxu0 %v1014
  %v1085 = vpop.f32.mrb[0].mxu0
  %v1086 = vadd.f32 0.0, %v1085
  %v1087 = vpop.f32.mrb[0].mxu0
  %1088 = vmatprep.mubr.f32.mxu0 0.0
  %1089 = vmatmul.mubr.f32.gmra.mrb[0].mxu0 %v1017
  %v1090 = vpop.f32.mrb[0].mxu0
  %v1091 = vadd.f32 0.0, %v1090
  %v1092 = vpop.f32.mrb[0].mxu0
  %1093 = vdwg.mxu0
  %1094 = vrot.lane.b32.xlu0 %v848, 64
  %v1095 = vpop.permute.xlu0 %1094
  %1096 = vrot.lane.b32.xlu0 %v853, 64
  %v1097 = vpop.permute.xlu0 %1096
  %1098 = vrot.lane.b32.xlu0 %v859, 64
  %v1099 = vpop.permute.xlu0 %1098
  %1100 = vrot.lane.b32.xlu0 %v861, 64
  %v1101 = vpop.permute.xlu0 %1100
  %1102 = vrot.lane.b32.xlu0 %v848, 32
  %v1103 = vpop.permute.xlu0 %1102
  %1104 = vrot.lane.b32.xlu0 %v853, 32
  %v1105 = vpop.permute.xlu0 %1104
  %v1106 = vsel %vm116, %v1095, 0
  %v1108 = vsel %vm116, %v1097, 0
  %v1110 = vsel %vm116, %v1099, 0
  %v1112 = vsel %vm116, %v1101, 0
  %v1114 = vsel %vm116, %v1103, 0
  %v1116 = vsel %vm116, %v1105, 0
  %1118 = vmatprep.subr.mxu0 0.0
  %1119 = vmatpush1.xpose.msra.mxu0 %v1114
  %1120 = vmatprep.subr.mxu0 0.0
  %1121 = vmatpush1.xpose.msra.mxu0 %v1116
  %1122 = vmatprep.subr.mxu0 0.0
  %1123 = vmatpush1.xpose.msra.mxu0 0.0
  %1124 = vmatprep.subr.mxu0 0.0
  %1125 = vmatpush1.xpose.msra.mxu0 0.0
  %1126 = vmatprep.subr.mxu0 0.0
  %1127 = vmatpush1.xpose.msra.mxu0 0.0
  %1128 = vmatprep.subr.mxu0 0.0
  %1129 = vmatpush1.xpose.msra.mxu0 0.0
  %1130 = vmatprep.subr.mxu0 0.0
  %1131 = vmatpush1.xpose.msra.mxu0 0.0
  %1132 = vmatprep.subr.mxu0 0.0
  %1133 = vmatpush1.xpose.msra.mxu0 0.0
  %1134 = vmatprep.subr.mxu0 0.0
  %1135 = vmatpush1.xpose.msra.mxu0 0.0
  %1136 = vmatprep.subr.mxu0 0.0
  %1137 = vmatpush1.xpose.msra.mxu0 0.0
  %1138 = vmatprep.subr.mxu0 0.0
  %1139 = vmatpush1.xpose.msra.mxu0 0.0
  %1140 = vmatprep.subr.mxu0 0.0
  %1141 = vmatpush1.xpose.msra.mxu0 0.0
  %1142 = vmatprep.subr.mxu0 0.0
  %1143 = vmatpush1.xpose.msra.mxu0 0.0
  %1144 = vmatprep.subr.mxu0 0.0
  %1145 = vmatpush1.xpose.msra.mxu0 0.0
  %1146 = vmatprep.subr.mxu0 0.0
  %1147 = vmatpush1.xpose.msra.mxu0 0.0
  %1148 = vmatprep.subr.mxu0 0.0
  %1149 = vmatpush1.xpose.msra.mxu0 0.0
  %1150 = vmatprep.subr.mxu0 0.0
  %1151 = vmatpush1.xpose.msra.mxu0 0.0
  %1152 = vmatprep.subr.mxu0 0.0
  %1153 = vmatpush1.xpose.msra.mxu0 0.0
  %1154 = vmatprep.subr.mxu0 0.0
  %1155 = vmatpush1.xpose.msra.mxu0 0.0
  %1156 = vmatprep.subr.mxu0 0.0
  %1157 = vmatpush1.xpose.msra.mxu0 0.0
  %1158 = vmatprep.subr.mxu0 0.0
  %1159 = vmatpush1.xpose.msra.mxu0 0.0
  %1160 = vmatprep.subr.mxu0 0.0
  %1161 = vmatpush1.xpose.msra.mxu0 0.0
  %1162 = vmatprep.subr.mxu0 0.0
  %1163 = vmatpush1.xpose.msra.mxu0 0.0
  %1164 = vmatprep.subr.mxu0 0.0
  %1165 = vmatpush1.xpose.msra.mxu0 0.0
  %1166 = vmatprep.subr.mxu0 0.0
  %1167 = vmatpush1.xpose.msra.mxu0 0.0
  %1168 = vmatprep.subr.mxu0 0.0
  %1169 = vmatpush1.xpose.msra.mxu0 0.0
  %1170 = vmatprep.subr.mxu0 0.0
  %1171 = vmatpush1.xpose.msra.mxu0 0.0
  %1172 = vmatprep.subr.mxu0 0.0
  %1173 = vmatpush1.xpose.msra.mxu0 0.0
  %1174 = vmatprep.subr.mxu0 0.0
  %1175 = vmatpush1.xpose.msra.mxu0 0.0
  %1176 = vmatprep.subr.mxu0 0.0
  %1177 = vmatpush1.xpose.msra.mxu0 0.0
  %1178 = vmatprep.subr.mxu0 0.0
  %1179 = vmatpush1.xpose.msra.mxu0 0.0
  %1180 = vmatprep.subr.mxu0 0.0
  %1181 = vmatpush1.xpose.msra.mxu0 0.0
  %1182 = vmatprep.mubr.f32.mxu0 0.0
  %1183 = vmatmul.mubr.f32.gmra.mrb[0].mxu0 %v1106
  %v1184 = vpop.f32.mrb[0].mxu0
  %v1185 = vadd.f32 0.0, %v1184
  %v1186 = vpop.f32.mrb[0].mxu0
  %1187 = vmatprep.mubr.f32.mxu0 0.0
  %1188 = vmatmul.mubr.f32.gmra.mrb[0].mxu0 %v1108
  %v1189 = vpop.f32.mrb[0].mxu0
  %v1190 = vadd.f32 0.0, %v1189
  %v1191 = vpop.f32.mrb[0].mxu0
  %1192 = vmatprep.mubr.f32.mxu0 0.0
  %1193 = vmatmul.mubr.f32.gmra.mrb[0].mxu0 %v1110
  %v1194 = vpop.f32.mrb[0].mxu0
  %v1195 = vadd.f32 0.0, %v1194
  %v1196 = vpop.f32.mrb[0].mxu0
  %1197 = vmatprep.mubr.f32.mxu0 0.0
  %1198 = vmatmul.mubr.f32.gmra.mrb[0].mxu0 %v1112
  %v1199 = vpop.f32.mrb[0].mxu0
  %v1200 = vadd.f32 0.0, %v1199
  %v1201 = vpop.f32.mrb[0].mxu0
  %1202 = vdwg.mxu0
  %v1203 = vmul.f32 %v1185, %v1185
  %v1204 = vmul.f32 %v1190, %v1190
  %v1205 = vmul.f32 %v1195, %v1195
  %v1206 = vmul.f32 %v1200, %v1200
  %v1207 = vadd.f32 %v1203, %v1205
  %v1208 = vadd.f32 %v1204, %v1206
  %v1209 = vrsqrt.pop %v1207
  %v1210 = vmul.f32 %v1207, %v1209
  %vm1211 = vcmp.eq.f32.partialorder %v1207, inf
  %v1212 = vsel %vm1211, %v1207, %v1210
  %vm1213 = vcmp.eq.f32.partialorder %v1207, 0.0
  %v1214 = vand.u32 %v1207, 2147483648
  %v1215 = vsel %vm1213, %v1214, %v1212
  %v1216 = vrsqrt.pop %v1208
  %v1217 = vmul.f32 %v1208, %v1216
  %vm1218 = vcmp.eq.f32.partialorder %v1208, inf
  %v1219 = vsel %vm1218, %v1208, %v1217
  %vm1220 = vcmp.eq.f32.partialorder %v1208, 0.0
  %v1221 = vand.u32 %v1208, 2147483648
  %v1222 = vsel %vm1220, %v1221, %v1219
  %v1223 = vadd.f32 %v1215, %v27
  %v1224 = vadd.f32 %v1222, %v28
  %v1225 = vsel %vm116, %v1223, -inf
  %1226 = vmax.xlane.f32.xlu0 %v1225
  %v1227 = vpop.xlane.xlu0 %1226
  %v1228 = vsel %vm116, %v1224, -inf
  %1229 = vmax.xlane.f32.xlu0 %v1228
  %v1230 = vpop.xlane.xlu0 %1229
  %v1231 = vsub.f32 %v1223, %v1227
  %v1232 = vsub.f32 %v1224, %v1230
  %v1233 = vmul.f32 %v1231, 1.442695
  %v1234 = vpow.pop %v1233
  %v1235 = vmul.f32 %v1232, 1.442695
  %v1236 = vpow.pop %v1235
  %v1237 = vsel %vm116, %v1234, 0.0
  %1238 = vadd.xlane.f32.xlu0 %v1237
  %v1239 = vpop.xlane.xlu0 %1238
  %v1240 = vsel %vm116, %v1236, 0.0
  %1241 = vadd.xlane.f32.xlu0 %v1240
  %v1242 = vpop.xlane.xlu0 %1241
  %v1243 = vrcp.pop %v1239
  %v1244 = vrcp.pop %v1242
  %v1245 = vmul.f32 %v1234, %v1243
  %v1246 = vmul.f32 %v1236, %v1244
  %1247 = vrot.lane.b32.xlu0 %v848, 16
  %v1248 = vpop.permute.xlu0 %1247
  %1249 = vrot.lane.b32.xlu0 %v853, 16
  %v1250 = vpop.permute.xlu0 %1249
  %v1254 = vsel %vm116, %v1245, 0
  %v1257 = vsel %vm116, %v1246, 0
  %1259 = vmatprep.subr.mxu0 0.0
  %1260 = vmatpush1.msra.mxu0 %v1248
  %1261 = vmatprep.subr.mxu0 0.0
  %1262 = vmatpush1.msra.mxu0 %v1250
  %1263 = vmatprep.subr.mxu0 0.0
  %1264 = vmatpush1.msra.mxu0 0.0
  %1265 = vmatprep.subr.mxu0 0.0
  %1266 = vmatpush1.msra.mxu0 0.0
  %1267 = vmatprep.subr.mxu0 0.0
  %1268 = vmatpush1.msra.mxu0 0.0
  %1269 = vmatprep.subr.mxu0 0.0
  %1270 = vmatpush1.msra.mxu0 0.0
  %1271 = vmatprep.subr.mxu0 0.0
  %1272 = vmatpush1.msra.mxu0 0.0
  %1273 = vmatprep.subr.mxu0 0.0
  %1274 = vmatpush1.msra.mxu0 0.0
  %1275 = vmatprep.subr.mxu0 0.0
  %1276 = vmatpush1.msra.mxu0 0.0
  %1277 = vmatprep.subr.mxu0 0.0
  %1278 = vmatpush1.msra.mxu0 0.0
  %1279 = vmatprep.subr.mxu0 0.0
  %1280 = vmatpush1.msra.mxu0 0.0
  %1281 = vmatprep.subr.mxu0 0.0
  %1282 = vmatpush1.msra.mxu0 0.0
  %1283 = vmatprep.subr.mxu0 0.0
  %1284 = vmatpush1.msra.mxu0 0.0
  %1285 = vmatprep.subr.mxu0 0.0
  %1286 = vmatpush1.msra.mxu0 0.0
  %1287 = vmatprep.subr.mxu0 0.0
  %1288 = vmatpush1.msra.mxu0 0.0
  %1289 = vmatprep.subr.mxu0 0.0
  %1290 = vmatpush1.msra.mxu0 0.0
  %1291 = vmatprep.subr.mxu0 0.0
  %1292 = vmatpush1.msra.mxu0 0.0
  %1293 = vmatprep.subr.mxu0 0.0
  %1294 = vmatpush1.msra.mxu0 0.0
  %1295 = vmatprep.subr.mxu0 0.0
  %1296 = vmatpush1.msra.mxu0 0.0
  %1297 = vmatprep.subr.mxu0 0.0
  %1298 = vmatpush1.msra.mxu0 0.0
  %1299 = vmatprep.subr.mxu0 0.0
  %1300 = vmatpush1.msra.mxu0 0.0
  %1301 = vmatprep.subr.mxu0 0.0
  %1302 = vmatpush1.msra.mxu0 0.0
  %1303 = vmatprep.subr.mxu0 0.0
  %1304 = vmatpush1.msra.mxu0 0.0
  %1305 = vmatprep.subr.mxu0 0.0
  %1306 = vmatpush1.msra.mxu0 0.0
  %1307 = vmatprep.subr.mxu0 0.0
  %1308 = vmatpush1.msra.mxu0 0.0
  %1309 = vmatprep.subr.mxu0 0.0
  %1310 = vmatpush1.msra.mxu0 0.0
  %1311 = vmatprep.subr.mxu0 0.0
  %1312 = vmatpush1.msra.mxu0 0.0
  %1313 = vmatprep.subr.mxu0 0.0
  %1314 = vmatpush1.msra.mxu0 0.0
  %1315 = vmatprep.subr.mxu0 0.0
  %1316 = vmatpush1.msra.mxu0 0.0
  %1317 = vmatprep.subr.mxu0 0.0
  %1318 = vmatpush1.msra.mxu0 0.0
  %1319 = vmatprep.subr.mxu0 0.0
  %1320 = vmatpush1.msra.mxu0 0.0
  %1321 = vmatprep.subr.mxu0 0.0
  %1322 = vmatpush1.msra.mxu0 0.0
  %1323 = vmatprep.mubr.f32.mxu0 0.0
  %1324 = vmatmul.mubr.f32.gmra.mrb[0].mxu0 %v1254
  %v1325 = vpop.f32.mrb[0].mxu0
  %v1326 = vadd.f32 0.0, %v1325
  %v1327 = vpop.f32.mrb[0].mxu0
  %1328 = vmatprep.mubr.f32.mxu0 0.0
  %1329 = vmatmul.mubr.f32.gmra.mrb[0].mxu0 %v1257
  %v1330 = vpop.f32.mrb[0].mxu0
  %v1331 = vadd.f32 0.0, %v1330
  %v1332 = vpop.f32.mrb[0].mxu0
  %1333 = vdwg.mxu0
  %1336 = vrot.lane.b32.xlu0 %v1326, 16
  %v1337 = vpop.permute.xlu0 %1336
  %1338 = vrot.lane.b32.xlu0 %v1331, 16
  %v1339 = vpop.permute.xlu0 %1338
  %v1342 = vsel %vm116, %v1086, %v1337
  %v1343 = vsel %vm116, %v1091, %v1339
  %s1344 = scalar_lea.vmem %s3, 32
  %v1345 = vld [vmem:[%s1344] sm:$0xff]
  %v1346 = vld [vmem:[%s1344 + $0x8] sm:$0xff]
  %v1347 = vld [vmem:[%s1344 + $0x10] sm:$0xff]
  %v1348 = vld [vmem:[%s1344 + $0x18] sm:$0xff]
  %v1350 = vsel %vm690, %v1342, 0
  %v1353 = vsel %vm690, %v1343, 0
  %1355 = vmatprep.subr.mxu0 0.0
  %1356 = vmatpush1.msra.mxu0 %v1345
  %1357 = vmatprep.subr.mxu0 0.0
  %1358 = vmatpush1.msra.mxu0 %v1346
  %1359 = vmatprep.subr.mxu0 0.0
  %1360 = vmatpush1.msra.mxu0 %v1347
  %1361 = vmatprep.subr.mxu0 0.0
  %1362 = vmatpush1.msra.mxu0 %v1348
  %1363 = vmatprep.subr.mxu0 0.0
  %1364 = vmatpush1.msra.mxu0 0.0
  %1365 = vmatprep.subr.mxu0 0.0
  %1366 = vmatpush1.msra.mxu0 0.0
  %1367 = vmatprep.subr.mxu0 0.0
  %1368 = vmatpush1.msra.mxu0 0.0
  %1369 = vmatprep.subr.mxu0 0.0
  %1370 = vmatpush1.msra.mxu0 0.0
  %1371 = vmatprep.subr.mxu0 0.0
  %1372 = vmatpush1.msra.mxu0 0.0
  %1373 = vmatprep.subr.mxu0 0.0
  %1374 = vmatpush1.msra.mxu0 0.0
  %1375 = vmatprep.subr.mxu0 0.0
  %1376 = vmatpush1.msra.mxu0 0.0
  %1377 = vmatprep.subr.mxu0 0.0
  %1378 = vmatpush1.msra.mxu0 0.0
  %1379 = vmatprep.subr.mxu0 0.0
  %1380 = vmatpush1.msra.mxu0 0.0
  %1381 = vmatprep.subr.mxu0 0.0
  %1382 = vmatpush1.msra.mxu0 0.0
  %1383 = vmatprep.subr.mxu0 0.0
  %1384 = vmatpush1.msra.mxu0 0.0
  %1385 = vmatprep.subr.mxu0 0.0
  %1386 = vmatpush1.msra.mxu0 0.0
  %1387 = vmatprep.subr.mxu0 0.0
  %1388 = vmatpush1.msra.mxu0 0.0
  %1389 = vmatprep.subr.mxu0 0.0
  %1390 = vmatpush1.msra.mxu0 0.0
  %1391 = vmatprep.subr.mxu0 0.0
  %1392 = vmatpush1.msra.mxu0 0.0
  %1393 = vmatprep.subr.mxu0 0.0
  %1394 = vmatpush1.msra.mxu0 0.0
  %1395 = vmatprep.subr.mxu0 0.0
  %1396 = vmatpush1.msra.mxu0 0.0
  %1397 = vmatprep.subr.mxu0 0.0
  %1398 = vmatpush1.msra.mxu0 0.0
  %1399 = vmatprep.subr.mxu0 0.0
  %1400 = vmatpush1.msra.mxu0 0.0
  %1401 = vmatprep.subr.mxu0 0.0
  %1402 = vmatpush1.msra.mxu0 0.0
  %1403 = vmatprep.subr.mxu0 0.0
  %1404 = vmatpush1.msra.mxu0 0.0
  %1405 = vmatprep.subr.mxu0 0.0
  %1406 = vmatpush1.msra.mxu0 0.0
  %1407 = vmatprep.subr.mxu0 0.0
  %1408 = vmatpush1.msra.mxu0 0.0
  %1409 = vmatprep.subr.mxu0 0.0
  %1410 = vmatpush1.msra.mxu0 0.0
  %1411 = vmatprep.subr.mxu0 0.0
  %1412 = vmatpush1.msra.mxu0 0.0
  %1413 = vmatprep.subr.mxu0 0.0
  %1414 = vmatpush1.msra.mxu0 0.0
  %1415 = vmatprep.subr.mxu0 0.0
  %1416 = vmatpush1.msra.mxu0 0.0
  %1417 = vmatprep.subr.mxu0 0.0
  %1418 = vmatpush1.msra.mxu0 0.0
  %1419 = vmatprep.mubr.f32.mxu0 0.0
  %1420 = vmatmul.mubr.f32.gmra.mrb[0].mxu0 %v1350
  %v1421 = vpop.f32.mrb[0].mxu0
  %v1422 = vadd.f32 0.0, %v1421
  %v1423 = vpop.f32.mrb[0].mxu0
  %1424 = vmatprep.mubr.f32.mxu0 0.0
  %1425 = vmatmul.mubr.f32.gmra.mrb[0].mxu0 %v1353
  %v1426 = vpop.f32.mrb[0].mxu0
  %v1427 = vadd.f32 0.0, %v1426
  %v1428 = vpop.f32.mrb[0].mxu0
  %1429 = vdwg.mxu0
  %v1430 = vadd.f32 %v1422, 0.033991124
  %v1431 = vadd.f32 %v1427, 0.033991124
  %vm1432 = vcmask 7168
  %1433 = vst.msk [vmem:[%s4] sm:$0xff] %vm1432, %v1430
  %1434 = vst.msk [vmem:[%s4 + $0x8] sm:$0xff] %vm1432, %v1431
  // Predicated region
  $region18: #{tpu_custom_call.1} parent=0 // pred_check
    _
  $region19: #{tpu_custom_call.1} parent=0 // pred_check_branch
    %1436 = sbr.rel (0) target = $region21
  $region20: #{tpu_custom_call.1} parent=0 // pred_region
    _
  $region21: #{tpu_custom_call.1} parent=0 // pred_fallthru
    _
  // Predicated region
  $region22: #{tpu_custom_call.1} parent=0 // pred_check
    _
  $region23: #{tpu_custom_call.1} parent=0 // pred_check_branch
    %1438 = sbr.rel (0) target = $region25
  $region24: #{tpu_custom_call.1} parent=0 // pred_region
    _
  $region25: #{tpu_custom_call.1} parent=0 // pred_fallthru
    _

</llo_original>
